<compile_context>
chip_gen: v6e
topology: v6e:2x2x1
jax: 0.10.0
libtpu: 0.0.40
codegen_flags: <defaults>
</compile_context>

<pallas_src>
import functools

import jax
import jax.numpy as jnp
from jax import lax
from jax.experimental import pallas as pl
from jax.experimental.pallas import tpu as pltpu


def _attention_kernel(x_ref, gamma_ref, beta_ref, wq_ref, wkT_ref, wvT_ref,
                      wout_ref, bout_ref, o_ref, kT_scr, vT_scr, *,
                      heads, dim_head, q_tile, eps):
    qi = pl.program_id(1)
    inner = heads * dim_head
    N = x_ref.shape[1]
    tq = q_tile

    gamma = gamma_ref[...].astype(jnp.float32)            # (1, D)
    beta = beta_ref[...].astype(jnp.float32)               # (1, D)

    def layernorm(xb):                                      # (rows, D) -> f32
        xf = xb.astype(jnp.float32)
        mean = jnp.mean(xf, axis=-1, keepdims=True)
        xc = xf - mean
        var = jnp.mean(xc * xc, axis=-1, keepdims=True)
        return xc * lax.rsqrt(var + eps) * gamma + beta

    # ---- once per batch element (first q-tile): resident K^T / V^T ----------
    # K^T[c, j] = sum_d w_k[d, c] * xn[j, d]   (trans-B matmul; no xn transpose,
    # no (N,H,dh)->(H,N,dh) head-split transpose).  Reshape (inner, N) ->
    # (H, dh, N) is a leading-dim split (cheap).
    @pl.when(qi == 0)
    def _():
        xn_full = layernorm(x_ref[0]).astype(jnp.bfloat16)          # (N, D)
        kT = lax.dot_general(wkT_ref[...], xn_full,
                             (((1,), (1,)), ((), ())),
                             preferred_element_type=jnp.float32)     # (inner, N)
        vT = lax.dot_general(wvT_ref[...], xn_full,
                             (((1,), (1,)), ((), ())),
                             preferred_element_type=jnp.float32)     # (inner, N)
        kT_scr[...] = kT.astype(jnp.bfloat16).reshape(heads, dim_head, N)
        vT_scr[...] = vT.astype(jnp.bfloat16).reshape(heads, dim_head, N)

    # ---- per q-tile ----------------------------------------------------------
    q_start = pl.multiple_of(qi * tq, tq)
    xn_q = layernorm(x_ref[0, pl.ds(q_start, tq), :]).astype(jnp.bfloat16)  # (tq, D)

    # Q projection (softmax scale pre-folded into w_q by the wrapper).
    q = jnp.dot(xn_q, wq_ref[...], preferred_element_type=jnp.float32)  # (tq, inner)
    # Only remaining head-split transpose (small: tq x inner, once per tile).
    qh = jnp.transpose(q.reshape(tq, heads, dim_head),
                       (1, 0, 2)).astype(jnp.bfloat16)                  # (H, tq, dh)

    kTh = kT_scr[...]                                                   # (H, dh, N)
    vTh = vT_scr[...]                                                   # (H, dh, N)

    # scores[h,i,j] = sum_d qh[h,i,d] * kTh[h,d,j]  -- standard batched matmul.
    dots = lax.dot_general(qh, kTh, (((2,), (1,)), ((0,), (0,))),
                           preferred_element_type=jnp.float32)          # (H, tq, N)

    # Numerically-stable softmax numerator in f32 (exp <= 1 -> bf16-safe for PV).
    m = jnp.max(dots, axis=-1, keepdims=True)
    e = jnp.exp(dots - m)                                               # (H, tq, N)
    denom = jnp.sum(e, axis=-1)                                         # (H, tq) f32

    # Unnormalized (attn @ V)^T per head: contract the key axis (last of both).
    outhT = lax.dot_general(vTh, e.astype(jnp.bfloat16),
                            (((2,), (2,)), ((0,), (0,))),
                            preferred_element_type=jnp.float32)         # (H, dh, tq)

    # Deferred softmax normalization (H*dh*tq multiplies, EUP reciprocal).
    recip = pl.reciprocal(denom, approx=True)                           # (H, tq)
    outhT = outhT * recip[:, None, :]                                   # (H, dh, tq)

    # Fused head-merge + output projection: leading-dim merge to (inner, tq),
    # contract dim 0 against w_out (inner, D) -> (tq, D), lane-dense store in D.
    out_flat = outhT.reshape(inner, tq).astype(jnp.bfloat16)
    y = lax.dot_general(out_flat, wout_ref[...], (((0,), (0,)), ((), ())),
                        preferred_element_type=jnp.float32)             # (tq, D)
    y = y + bout_ref[...].astype(jnp.float32)
    o_ref[0] = y.astype(o_ref.dtype)


def attention_forward(x, gamma, beta, w_qkv, w_out, b_out, *, heads, dim_head,
                      eps=1e-5, q_tile=None):
    """x: (B, N, D).  Returns (B, N, D)."""
    B, N, D = x.shape
    inner = heads * dim_head
    assert w_qkv.shape == (D, 3 * inner)
    assert w_out.shape == (inner, D)
    out_dtype = x.dtype

    if q_tile is None:
        q_tile = N if N <= 128 else 128
    assert N % q_tile == 0, "TODO(synk): ragged q-tiles (pad N) not handled"
    nq = N // q_tile

    scale = float(dim_head) ** -0.5

    # Wrapper-side layout plumbing (done once, outside the kernel):
    #  * split fused QKV weight; fold the softmax scale into w_q (no per-score
    #    rescale; dh**-0.5 is far from bf16 denormals at these sizes)
    #  * pre-transpose w_k / w_v so K^T / V^T come out of a trans-B matmul
    #  * cast matmul weights to bf16 (native MXU dtype, half the weight DMA)
    w_q = (w_qkv[:, 0 * inner:1 * inner] * scale).astype(jnp.bfloat16)   # (D, inner)
    w_kT = jnp.transpose(w_qkv[:, 1 * inner:2 * inner]).astype(jnp.bfloat16)  # (inner, D)
    w_vT = jnp.transpose(w_qkv[:, 2 * inner:3 * inner]).astype(jnp.bfloat16)  # (inner, D)
    w_o = w_out.astype(jnp.bfloat16)                                     # (inner, D)

    gamma2 = gamma.reshape(1, D).astype(jnp.float32)
    beta2 = beta.reshape(1, D).astype(jnp.float32)
    bout2 = b_out.reshape(1, D).astype(jnp.float32)

    # x in bf16 at the pallas_call boundary (halves the per-step HBM traffic);
    # the kernel upcasts to f32 for LayerNorm/softmax.
    x_b = x.astype(jnp.bfloat16)

    # Generation-aware scoped-VMEM limit (48 MiB is fine on v5e/v6e's 128 MiB,
    # too close to v7x's 64 MiB per-core VMEM).
    try:
        vmem_cap = pltpu.get_tpu_info().vmem_capacity_bytes
    except Exception:  # conservative fallback if the query is unavailable
        vmem_cap = 128 * 1024 * 1024
    vmem_limit = int(min(48 * 1024 * 1024, 0.55 * vmem_cap))

    kernel = functools.partial(_attention_kernel, heads=heads,
                               dim_head=dim_head, q_tile=q_tile, eps=eps)

    # Constant-index blocks (weights / LN params / bias): single-buffered — the
    # block never changes, double-buffering only wastes VMEM.
    def wspec(shape):
        return pl.BlockSpec(shape, lambda b, qi: (0, 0),
                            pipeline_mode=pl.Buffered(1))

    return pl.pallas_call(
        kernel,
        out_shape=jax.ShapeDtypeStruct((B, N, D), out_dtype),
        grid_spec=pltpu.PrefetchScalarGridSpec(
            num_scalar_prefetch=0,
            grid=(B, nq),
            in_specs=[
                pl.BlockSpec((1, N, D), lambda b, qi: (b, 0, 0)),   # x (full seq)
                wspec((1, D)),                                      # gamma
                wspec((1, D)),                                      # beta
                wspec((D, inner)),                                  # w_q (pre-scaled)
                wspec((inner, D)),                                  # w_k^T
                wspec((inner, D)),                                  # w_v^T
                wspec((inner, D)),                                  # w_out
                wspec((1, D)),                                      # b_out
            ],
            out_specs=pl.BlockSpec((1, q_tile, D), lambda b, qi: (b, qi, 0)),
            scratch_shapes=[
                pltpu.VMEM((heads, dim_head, N), jnp.bfloat16),     # K^T (resident per b)
                pltpu.VMEM((heads, dim_head, N), jnp.bfloat16),     # V^T (resident per b)
            ],
        ),
        compiler_params=pltpu.CompilerParams(
            # q-tile axis is "arbitrary" because K^T/V^T scratch is carried
            # across tiles within a batch element; B stays "parallel".
            dimension_semantics=("parallel", "arbitrary"),
            vmem_limit_bytes=vmem_limit,
        ),
    )(x_b, gamma2, beta2, w_q, w_kT, w_vT, w_o, bout2)


def reference_forward(x, gamma, beta, w_qkv, w_out, b_out, *, heads, dim_head,
                      eps=1e-5):
    """Plain-JAX f32 reference mirroring the PyTorch module (dropout=0)."""
    B, N, D = x.shape
    mean = jnp.mean(x, axis=-1, keepdims=True)
    var = jnp.mean((x - mean) ** 2, axis=-1, keepdims=True)
    xn = (x - mean) / jnp.sqrt(var + eps) * gamma + beta
    qkv = xn @ w_qkv                                       # (B, N, 3*H*dh)
    q, k, v = jnp.split(qkv, 3, axis=-1)

    def to_heads(t):
        return t.reshape(B, N, heads, dim_head).transpose(0, 2, 1, 3)

    q, k, v = map(to_heads, (q, k, v))                     # (B, H, N, dh)
    dots = jnp.einsum('bhnd,bhmd->bhnm', q, k) * (dim_head ** -0.5)
    attn = jax.nn.softmax(dots, axis=-1)
    out = jnp.einsum('bhnm,bhmd->bhnd', attn, v)
    out = out.transpose(0, 2, 1, 3).reshape(B, N, heads * dim_head)
    return out @ w_out + b_out


if __name__ == "__main__":
    # Small shapes consistent with the module's forward (toy sizes: production
    # tuning should use N multiple of 128 and D/inner multiples of 128).
    B, N, D = 2, 8, 32
    heads, dim_head = 4, 16
    inner = heads * dim_head

    key = jax.random.PRNGKey(0)
    kx, kqkv, kwo, kbo = jax.random.split(key, 4)

    x = jax.random.normal(kx, (B, N, D), dtype=jnp.float32)

    # Deterministic synthetic parameters (not a checkpoint).
    gamma = jnp.ones((D,), dtype=jnp.float32)              # LayerNorm weight
    beta = jnp.zeros((D,), dtype=jnp.float32)              # LayerNorm bias
    w_qkv = jax.random.normal(kqkv, (D, 3 * inner), dtype=jnp.float32) * 0.05
    w_out = jax.random.normal(kwo, (inner, D), dtype=jnp.float32) * 0.05
    b_out = jax.random.normal(kbo, (D,), dtype=jnp.float32) * 0.01

    y = attention_forward(x, gamma, beta, w_qkv, w_out, b_out,
                          heads=heads, dim_head=dim_head)
    y = jax.block_until_ready(y)

    y_ref = reference_forward(x, gamma, beta, w_qkv, w_out, b_out,
                              heads=heads, dim_head=dim_head)
    assert y.shape == (B, N, D)
    # bf16 inputs/operands + approximate reciprocal -> loose tolerance vs the
    # pure-f32 reference.
    assert jnp.allclose(y, y_ref, atol=3e-2, rtol=3e-2), "mismatch vs reference"

    print("KERNEL_OK")
</pallas_src>

<mosaic_0001>
module attributes {stable_mosaic.version = 11 : i64} {
  func.func @_attention_kernel(%arg0: i32, %arg1: i32, %arg2: memref<1x8x32xbf16, #tpu.memory_space<vmem>>, %arg3: memref<1x32xf32, #tpu.memory_space<vmem>>, %arg4: memref<1x32xf32, #tpu.memory_space<vmem>>, %arg5: memref<32x64xbf16, #tpu.memory_space<vmem>>, %arg6: memref<64x32xbf16, #tpu.memory_space<vmem>>, %arg7: memref<64x32xbf16, #tpu.memory_space<vmem>>, %arg8: memref<64x32xbf16, #tpu.memory_space<vmem>>, %arg9: memref<1x32xf32, #tpu.memory_space<vmem>>, %arg10: memref<1x8x32xf32, #tpu.memory_space<vmem>>, %arg11: memref<4x16x8xbf16, #tpu.memory_space<vmem>>, %arg12: memref<4x16x8xbf16, #tpu.memory_space<vmem>>) attributes {dimension_semantics = [#tpu.dimension_semantics<parallel>, #tpu.dimension_semantics<arbitrary>], iteration_bounds = array<i64: 2, 1>, scalar_prefetch = 0 : i64, scratch_operands = 2 : i64, tpu.core_type = #tpu.core_type<tc>, window_params = [{transform_indices = @transform_0, window_bounds = array<i64: 1, 8, 32>}, {pipeline_mode = #tpu.pipeline_mode<synchronous>, transform_indices = @transform_1, window_bounds = array<i64: 1, 32>}, {pipeline_mode = #tpu.pipeline_mode<synchronous>, transform_indices = @transform_2, window_bounds = array<i64: 1, 32>}, {pipeline_mode = #tpu.pipeline_mode<synchronous>, transform_indices = @transform_3, window_bounds = array<i64: 32, 64>}, {pipeline_mode = #tpu.pipeline_mode<synchronous>, transform_indices = @transform_4, window_bounds = array<i64: 64, 32>}, {pipeline_mode = #tpu.pipeline_mode<synchronous>, transform_indices = @transform_5, window_bounds = array<i64: 64, 32>}, {pipeline_mode = #tpu.pipeline_mode<synchronous>, transform_indices = @transform_6, window_bounds = array<i64: 64, 32>}, {pipeline_mode = #tpu.pipeline_mode<synchronous>, transform_indices = @transform_7, window_bounds = array<i64: 1, 32>}, {transform_indices = @transform_8, window_bounds = array<i64: 1, 8, 32>}]} {
    %c0 = arith.constant 0 : index
    %c0_0 = arith.constant 0 : index
    %0 = vector.load %arg3[%c0, %c0_0] : memref<1x32xf32, #tpu.memory_space<vmem>>, vector<1x32xf32>
    %c0_1 = arith.constant 0 : index
    %c0_2 = arith.constant 0 : index
    %1 = vector.load %arg4[%c0_1, %c0_2] : memref<1x32xf32, #tpu.memory_space<vmem>>, vector<1x32xf32>
    %c0_i32 = arith.constant 0 : i32
    %2 = arith.cmpi eq, %arg1, %c0_i32 : i32
    %3 = arith.extui %2 : i1 to i32
    %c0_i32_3 = arith.constant 0 : i32
    %4 = arith.cmpi ne, %3, %c0_i32_3 : i32
    scf.if %4 {
      %c0_31 = arith.constant 0 : index
      %c0_32 = arith.constant 0 : index
      %c0_33 = arith.constant 0 : index
      %62 = vector.load %arg2[%c0_31, %c0_32, %c0_33] : memref<1x8x32xbf16, #tpu.memory_space<vmem>>, vector<1x8x32xbf16>
      %63 = vector.shape_cast %62 : vector<1x8x32xbf16> to vector<8x32xbf16>
      %64 = arith.extf %63 : vector<8x32xbf16> to vector<8x32xf32>
      %cst_34 = arith.constant dense<0.000000e+00> : vector<8xf32>
      %65 = vector.multi_reduction <add>, %64, %cst_34 [1] : vector<8x32xf32> to vector<8xf32>
      %66 = vector.shape_cast %65 : vector<8xf32> to vector<8x1xf32>
      %cst_35 = arith.constant 3.200000e+01 : f32
      %67 = vector.broadcast %cst_35 : f32 to vector<8x1xf32>
      %68 = arith.divf %66, %67 : vector<8x1xf32>
      %69 = vector.broadcast %68 : vector<8x1xf32> to vector<8x32xf32>
      %70 = arith.subf %64, %69 : vector<8x32xf32>
      %71 = arith.mulf %70, %70 : vector<8x32xf32>
      %cst_36 = arith.constant dense<0.000000e+00> : vector<8xf32>
      %72 = vector.multi_reduction <add>, %71, %cst_36 [1] : vector<8x32xf32> to vector<8xf32>
      %73 = vector.shape_cast %72 : vector<8xf32> to vector<8x1xf32>
      %cst_37 = arith.constant 3.200000e+01 : f32
      %74 = vector.broadcast %cst_37 : f32 to vector<8x1xf32>
      %75 = arith.divf %73, %74 : vector<8x1xf32>
      %cst_38 = arith.constant 9.99999974E-6 : f32
      %76 = vector.broadcast %cst_38 : f32 to vector<8x1xf32>
      %77 = arith.addf %75, %76 : vector<8x1xf32>
      %78 = math.rsqrt %77 : vector<8x1xf32>
      %79 = vector.broadcast %78 : vector<8x1xf32> to vector<8x32xf32>
      %80 = arith.mulf %70, %79 : vector<8x32xf32>
      %81 = vector.broadcast %0 : vector<1x32xf32> to vector<8x32xf32>
      %82 = arith.mulf %80, %81 : vector<8x32xf32>
      %83 = vector.broadcast %1 : vector<1x32xf32> to vector<8x32xf32>
      %84 = arith.addf %82, %83 : vector<8x32xf32>
      %85 = arith.truncf %84 : vector<8x32xf32> to vector<8x32xbf16>
      %c0_39 = arith.constant 0 : index
      %c0_40 = arith.constant 0 : index
      %86 = vector.load %arg6[%c0_39, %c0_40] : memref<64x32xbf16, #tpu.memory_space<vmem>>, vector<64x32xbf16>
      %cst_41 = arith.constant dense<0.000000e+00> : vector<64x8xf32>
      %87 = tpu.matmul %86, %85, %cst_41 {dimension_numbers = #tpu.dot_dimension_numbers<[1], [1], [0], [0], [0, 0, 1, 0], [], []>} : vector<64x32xbf16>, vector<8x32xbf16>, vector<64x8xf32> -> vector<64x8xf32>
      %c0_42 = arith.constant 0 : index
      %c0_43 = arith.constant 0 : index
      %88 = vector.load %arg7[%c0_42, %c0_43] : memref<64x32xbf16, #tpu.memory_space<vmem>>, vector<64x32xbf16>
      %cst_44 = arith.constant dense<0.000000e+00> : vector<64x8xf32>
      %89 = tpu.matmul %88, %85, %cst_44 {dimension_numbers = #tpu.dot_dimension_numbers<[1], [1], [0], [0], [0, 0, 1, 0], [], []>} : vector<64x32xbf16>, vector<8x32xbf16>, vector<64x8xf32> -> vector<64x8xf32>
      %90 = arith.truncf %87 : vector<64x8xf32> to vector<64x8xbf16>
      %91 = vector.shape_cast %90 : vector<64x8xbf16> to vector<4x16x8xbf16>
      %c0_45 = arith.constant 0 : index
      %c0_46 = arith.constant 0 : index
      %c0_47 = arith.constant 0 : index
      %92 = vector.load %arg11[%c0_45, %c0_46, %c0_47] : memref<4x16x8xbf16, #tpu.memory_space<vmem>>, vector<4x16x8xbf16>
      tpu.vector_store %arg11[%c0_45, %c0_46, %c0_47], %91 {strides = array<i32>} : memref<4x16x8xbf16, #tpu.memory_space<vmem>>, vector<4x16x8xbf16>,
      %93 = arith.truncf %89 : vector<64x8xf32> to vector<64x8xbf16>
      %94 = vector.shape_cast %93 : vector<64x8xbf16> to vector<4x16x8xbf16>
      %c0_48 = arith.constant 0 : index
      %c0_49 = arith.constant 0 : index
      %c0_50 = arith.constant 0 : index
      %95 = vector.load %arg12[%c0_48, %c0_49, %c0_50] : memref<4x16x8xbf16, #tpu.memory_space<vmem>>, vector<4x16x8xbf16>
      tpu.vector_store %arg12[%c0_48, %c0_49, %c0_50], %94 {strides = array<i32>} : memref<4x16x8xbf16, #tpu.memory_space<vmem>>, vector<4x16x8xbf16>,
    } else {
    }
    %c8_i32 = arith.constant 8 : i32
    %5 = arith.muli %arg1, %c8_i32 : i32
    %6 = tpu.assume_multiple %5, 8 : i32
    %c0_4 = arith.constant 0 : index
    %7 = arith.index_cast %6 : i32 to index
    %c0_5 = arith.constant 0 : index
    %8 = vector.load %arg2[%c0_4, %7, %c0_5] : memref<1x8x32xbf16, #tpu.memory_space<vmem>>, vector<1x8x32xbf16>
    %9 = vector.shape_cast %8 : vector<1x8x32xbf16> to vector<8x32xbf16>
    %10 = arith.extf %9 : vector<8x32xbf16> to vector<8x32xf32>
    %cst = arith.constant dense<0.000000e+00> : vector<8xf32>
    %11 = vector.multi_reduction <add>, %10, %cst [1] : vector<8x32xf32> to vector<8xf32>
    %12 = vector.shape_cast %11 : vector<8xf32> to vector<8x1xf32>
    %cst_6 = arith.constant 3.200000e+01 : f32
    %13 = vector.broadcast %cst_6 : f32 to vector<8x1xf32>
    %14 = arith.divf %12, %13 : vector<8x1xf32>
    %15 = vector.broadcast %14 : vector<8x1xf32> to vector<8x32xf32>
    %16 = arith.subf %10, %15 : vector<8x32xf32>
    %17 = arith.mulf %16, %16 : vector<8x32xf32>
    %cst_7 = arith.constant dense<0.000000e+00> : vector<8xf32>
    %18 = vector.multi_reduction <add>, %17, %cst_7 [1] : vector<8x32xf32> to vector<8xf32>
    %19 = vector.shape_cast %18 : vector<8xf32> to vector<8x1xf32>
    %cst_8 = arith.constant 3.200000e+01 : f32
    %20 = vector.broadcast %cst_8 : f32 to vector<8x1xf32>
    %21 = arith.divf %19, %20 : vector<8x1xf32>
    %cst_9 = arith.constant 9.99999974E-6 : f32
    %22 = vector.broadcast %cst_9 : f32 to vector<8x1xf32>
    %23 = arith.addf %21, %22 : vector<8x1xf32>
    %24 = math.rsqrt %23 : vector<8x1xf32>
    %25 = vector.broadcast %24 : vector<8x1xf32> to vector<8x32xf32>
    %26 = arith.mulf %16, %25 : vector<8x32xf32>
    %27 = vector.broadcast %0 : vector<1x32xf32> to vector<8x32xf32>
    %28 = arith.mulf %26, %27 : vector<8x32xf32>
    %29 = vector.broadcast %1 : vector<1x32xf32> to vector<8x32xf32>
    %30 = arith.addf %28, %29 : vector<8x32xf32>
    %31 = arith.truncf %30 : vector<8x32xf32> to vector<8x32xbf16>
    %c0_10 = arith.constant 0 : index
    %c0_11 = arith.constant 0 : index
    %32 = vector.load %arg5[%c0_10, %c0_11] : memref<32x64xbf16, #tpu.memory_space<vmem>>, vector<32x64xbf16>
    %cst_12 = arith.constant dense<0.000000e+00> : vector<8x64xf32>
    %33 = tpu.matmul %31, %32, %cst_12 {dimension_numbers = #tpu.dot_dimension_numbers<[1], [0], [0], [1], [0, 0, 1, 1], [], []>} : vector<8x32xbf16>, vector<32x64xbf16>, vector<8x64xf32> -> vector<8x64xf32>
    %34 = vector.shape_cast %33 : vector<8x64xf32> to vector<8x4x16xf32>
    %35 = tpu.transpose %34, [1, 0, 2] : vector<8x4x16xf32> -> vector<4x8x16xf32>
    %36 = arith.truncf %35 : vector<4x8x16xf32> to vector<4x8x16xbf16>
    %c0_13 = arith.constant 0 : index
    %c0_14 = arith.constant 0 : index
    %c0_15 = arith.constant 0 : index
    %37 = vector.load %arg11[%c0_13, %c0_14, %c0_15] : memref<4x16x8xbf16, #tpu.memory_space<vmem>>, vector<4x16x8xbf16>
    %c0_16 = arith.constant 0 : index
    %c0_17 = arith.constant 0 : index
    %c0_18 = arith.constant 0 : index
    %38 = vector.load %arg12[%c0_16, %c0_17, %c0_18] : memref<4x16x8xbf16, #tpu.memory_space<vmem>>, vector<4x16x8xbf16>
    %cst_19 = arith.constant dense<0.000000e+00> : vector<4x8x8xf32>
    %39 = tpu.matmul %36, %37, %cst_19 {dimension_numbers = #tpu.dot_dimension_numbers<[2], [1], [1], [2], [0, 0, 0, 1, 1, 2], [0], [0]>} : vector<4x8x16xbf16>, vector<4x16x8xbf16>, vector<4x8x8xf32> -> vector<4x8x8xf32>
    %cst_20 = arith.constant dense<0xFF800000> : vector<4x8xf32>
    %40 = vector.multi_reduction <maximumf>, %39, %cst_20 [2] : vector<4x8x8xf32> to vector<4x8xf32>
    %41 = vector.shape_cast %40 : vector<4x8xf32> to vector<4x8x1xf32>
    %42 = vector.broadcast %41 : vector<4x8x1xf32> to vector<4x8x8xf32>
    %43 = arith.subf %39, %42 : vector<4x8x8xf32>
    %44 = math.exp %43 : vector<4x8x8xf32>
    %cst_21 = arith.constant dense<0.000000e+00> : vector<4x8xf32>
    %45 = vector.multi_reduction <add>, %44, %cst_21 [2] : vector<4x8x8xf32> to vector<4x8xf32>
    %46 = arith.truncf %44 : vector<4x8x8xf32> to vector<4x8x8xbf16>
    %cst_22 = arith.constant dense<0.000000e+00> : vector<4x16x8xf32>
    %47 = tpu.matmul %38, %46, %cst_22 {dimension_numbers = #tpu.dot_dimension_numbers<[2], [2], [1], [1], [0, 0, 0, 1, 1, 1], [0], [0]>} : vector<4x16x8xbf16>, vector<4x8x8xbf16>, vector<4x16x8xf32> -> vector<4x16x8xf32>
    %48 = tpu.reciprocal %45 {approx = true} : vector<4x8xf32> -> vector<4x8xf32>
    %49 = vector.shape_cast %48 : vector<4x8xf32> to vector<4x1x8xf32>
    %50 = vector.broadcast %49 : vector<4x1x8xf32> to vector<4x16x8xf32>
    %51 = arith.mulf %47, %50 : vector<4x16x8xf32>
    %52 = vector.shape_cast %51 : vector<4x16x8xf32> to vector<64x8xf32>
    %53 = arith.truncf %52 : vector<64x8xf32> to vector<64x8xbf16>
    %c0_23 = arith.constant 0 : index
    %c0_24 = arith.constant 0 : index
    %54 = vector.load %arg8[%c0_23, %c0_24] : memref<64x32xbf16, #tpu.memory_space<vmem>>, vector<64x32xbf16>
    %cst_25 = arith.constant dense<0.000000e+00> : vector<8x32xf32>
    %55 = tpu.matmul %53, %54, %cst_25 {dimension_numbers = #tpu.dot_dimension_numbers<[0], [0], [1], [1], [0, 1, 1, 1], [], []>} : vector<64x8xbf16>, vector<64x32xbf16>, vector<8x32xf32> -> vector<8x32xf32>
    %c0_26 = arith.constant 0 : index
    %c0_27 = arith.constant 0 : index
    %56 = vector.load %arg9[%c0_26, %c0_27] : memref<1x32xf32, #tpu.memory_space<vmem>>, vector<1x32xf32>
    %57 = vector.broadcast %56 : vector<1x32xf32> to vector<8x32xf32>
    %58 = arith.addf %55, %57 : vector<8x32xf32>
    %c0_28 = arith.constant 0 : index
    %c0_29 = arith.constant 0 : index
    %c0_30 = arith.constant 0 : index
    %59 = vector.load %arg10[%c0_28, %c0_29, %c0_30] : memref<1x8x32xf32, #tpu.memory_space<vmem>>, vector<1x8x32xf32>
    %60 = vector.shape_cast %59 : vector<1x8x32xf32> to vector<8x32xf32>
    %61 = vector.shape_cast %58 : vector<8x32xf32> to vector<1x8x32xf32>
    tpu.vector_store %arg10[%c0_28, %c0_29, %c0_30], %61 {strides = array<i32>} : memref<1x8x32xf32, #tpu.memory_space<vmem>>, vector<1x8x32xf32>,
    return
  }
  func.func @transform_0(%arg0: i32, %arg1: i32) -> (i32, i32, i32) {
    %c0_i32 = arith.constant 0 : i32
    %c0_i32_0 = arith.constant 0 : i32
    %c0_i32_1 = arith.constant 0 : i32
    return %arg0, %c0_i32, %c0_i32_0 : i32, i32, i32
  }
  func.func @transform_1(%arg0: i32, %arg1: i32) -> (i32, i32) {
    %c0_i32 = arith.constant 0 : i32
    %c0_i32_0 = arith.constant 0 : i32
    %c0_i32_1 = arith.constant 0 : i32
    return %c0_i32, %c0_i32_0 : i32, i32
  }
  func.func @transform_2(%arg0: i32, %arg1: i32) -> (i32, i32) {
    %c0_i32 = arith.constant 0 : i32
    %c0_i32_0 = arith.constant 0 : i32
    %c0_i32_1 = arith.constant 0 : i32
    return %c0_i32, %c0_i32_0 : i32, i32
  }
  func.func @transform_3(%arg0: i32, %arg1: i32) -> (i32, i32) {
    %c0_i32 = arith.constant 0 : i32
    %c0_i32_0 = arith.constant 0 : i32
    %c0_i32_1 = arith.constant 0 : i32
    return %c0_i32, %c0_i32_0 : i32, i32
  }
  func.func @transform_4(%arg0: i32, %arg1: i32) -> (i32, i32) {
    %c0_i32 = arith.constant 0 : i32
    %c0_i32_0 = arith.constant 0 : i32
    %c0_i32_1 = arith.constant 0 : i32
    return %c0_i32, %c0_i32_0 : i32, i32
  }
  func.func @transform_5(%arg0: i32, %arg1: i32) -> (i32, i32) {
    %c0_i32 = arith.constant 0 : i32
    %c0_i32_0 = arith.constant 0 : i32
    %c0_i32_1 = arith.constant 0 : i32
    return %c0_i32, %c0_i32_0 : i32, i32
  }
  func.func @transform_6(%arg0: i32, %arg1: i32) -> (i32, i32) {
    %c0_i32 = arith.constant 0 : i32
    %c0_i32_0 = arith.constant 0 : i32
    %c0_i32_1 = arith.constant 0 : i32
    return %c0_i32, %c0_i32_0 : i32, i32
  }
  func.func @transform_7(%arg0: i32, %arg1: i32) -> (i32, i32) {
    %c0_i32 = arith.constant 0 : i32
    %c0_i32_0 = arith.constant 0 : i32
    %c0_i32_1 = arith.constant 0 : i32
    return %c0_i32, %c0_i32_0 : i32, i32
  }
  func.func @transform_8(%arg0: i32, %arg1: i32) -> (i32, i32, i32) {
    %c0_i32 = arith.constant 0 : i32
    %c0_i32_0 = arith.constant 0 : i32
    return %arg0, %arg1, %c0_i32 : i32, i32, i32
  }
}

</mosaic_0001>

<llo_original>
// kernel: tpu_custom_call.1
$region0: #{tpu_custom_call.1}
  #allocation0 [shape = 'u32[]', space=smem, size = 0x4, offset = 0x4, fixed_abs, tag = 'smem constant byte address 0x4 - core index']
  #allocation1 [shape = 'u32[144,128]{1,0:T(1,128)}', space=vmem, size = 0x12000, scoped, tag = 'internal scratch']
  #allocation2 [shape = 'bf16[4,16,8]{2,1,0:T(8,128)(2,1)}', space=vmem, size = 0x4000, scoped, tag = 'scratch operand']
  #allocation3 [shape = 'bf16[4,16,8]{2,1,0:T(8,128)(2,1)}', space=vmem, size = 0x4000, scoped, tag = 'scratch operand']
  %s0 = inlined_call_operand.vmem [shape: bf16[2,8,32], index: 0, kind: input, shape index: {}]
  %s1 = inlined_call_operand.vmem [shape: f32[1,32], index: 1, kind: input, shape index: {}]
  %s2 = inlined_call_operand.vmem [shape: f32[1,32], index: 2, kind: input, shape index: {}]
  %s3 = inlined_call_operand.vmem [shape: bf16[32,64], index: 3, kind: input, shape index: {}]
  %s4 = inlined_call_operand.vmem [shape: bf16[64,32], index: 4, kind: input, shape index: {}]
  %s5 = inlined_call_operand.vmem [shape: bf16[64,32], index: 5, kind: input, shape index: {}]
  %s6 = inlined_call_operand.vmem [shape: bf16[64,32], index: 6, kind: input, shape index: {}]
  %s7 = inlined_call_operand.vmem [shape: f32[1,32], index: 7, kind: input, shape index: {}]
  %s8 = inlined_call_operand.hbm [shape: f32[2,8,32], index: 8, kind: output, shape index: {}]
  %s9 = sld [smem:[#allocation0]]
  $region69: #{tpu_custom_call.1} parent=0
    _
  %s11 = ssub.s32 1, %s9
  %s12 = scalar_select 0, %s11, %s9
  $region1: #{tpu_custom_call.1} parent=0
    #allocation4 [shape = 'u8[8192]{0}', space=vmem, size = 0x2000, scoped, tag = 'output window, operand 0']
    #allocation5 [shape = 's32[2]{0}', space=sflag, size = 0x8, scoped, tag = 'scoped memory for tpu_custom_call.1']
    %13 = vsyncpa [#allocation5], 0
    %s14 = scalar_lea.sflag [#allocation5], 1
    %15 = vsyncpa %s14, 0
    loop: start=0, step=1, limit=4
    $region2: #{tpu_custom_call.1} parent=1 // loop_pre_header
      _
    $region3: #{tpu_custom_call.1} parent=1 // loop_header
      %s17 = sphi 0, %s21
      %p18 = scmp.ge.s32.totalorder %s17, 4
      %s24 = sphi 0, %s36
      %s25 = sphi 0, %s32
      %s26 = sphi 0, %s24
      %s27 = sphi 0, %s25
      %s28 = sphi 0, %s26
      %s29 = sphi 0, %s27
      %s39 = sphi 0, %s41
      %s42 = sphi 0, %s39
      %s43 = sphi 0, %s42
      %s59 = sphi 0, %s43
      %s63 = sphi 0, %s63
      %s65 = sphi 0, %s63
      %s66 = sphi 0, %s65
      %s80 = sphi 0, %s66
      %s84 = sphi 0, %s84
      %s86 = sphi 0, %s84
      %s87 = sphi 0, %s86
      %s101 = sphi 0, %s87
      %s105 = sphi 0, %s105
      %s107 = sphi 0, %s105
      %s108 = sphi 0, %s107
      %s122 = sphi 0, %s108
      %s126 = sphi 0, %s126
      %s128 = sphi 0, %s126
      %s129 = sphi 0, %s128
      %s143 = sphi 0, %s129
      %s147 = sphi 0, %s147
      %s149 = sphi 0, %s147
      %s150 = sphi 0, %s149
      %s164 = sphi 0, %s150
      %s168 = sphi 0, %s168
      %s170 = sphi 0, %s168
      %s171 = sphi 0, %s170
      %s185 = sphi 0, %s171
      %s189 = sphi 0, %s189
      %s191 = sphi 0, %s189
      %s192 = sphi 0, %s191
      %s206 = sphi 0, %s192
      %s214 = sphi 0, %s216
      %s217 = sphi 0, %s214
      %s218 = sphi 0, %s217
      %s234 = sphi 0, %s218
    $region4: #{tpu_custom_call.1} parent=1 // loop_header_branch
      %20 = sbr.rel (%p18) target = $region8
    $region5: #{tpu_custom_call.1} parent=1 // loop_body
      %s22 = ssub.s32 %s17, 1
      %s23 = ssub.s32 %s17, 2
      %s30 = sadd.s32 1, %s25
      %p31 = scmp.ge.s32.totalorder %s30, 1
      %s32 = scalar_select %p31, 0, %s30
      %s33 = sadd.s32 1, %s24
      %s34 = scalar_select %p31, %s33, %s24
      %p35 = scmp.ge.s32.totalorder %s34, 2
      %s36 = scalar_select %p35, 0, %s34
      %s37 = ssub.s32 %s24, %s36
      %p38 = scmp.eq.s32.totalorder %s37, 0
      %s40 = sadd.s32 %s39, 1
      %s41 = scalar_select %p38, %s39, %s40
      %p44 = pneg %p38
      %p45 = scmp.eq.s32.totalorder %s17, 1
      %p46 = por %p44, %p45
      %p47 = scmp.ne.s32.totalorder %s39, %s42
      %p48 = scmp.eq.s32.totalorder %s17, 0
      %p49 = por %p47, %p48
      %p50 = scmp.ne.s32.totalorder %s39, %s42
      %p51 = scmp.eq.s32.totalorder %s22, 1
      %p52 = por %p50, %p51
      %p53 = scmp.ne.s32.totalorder %s42, %s43
      %p54 = scmp.eq.s32.totalorder %s22, 0
      %p55 = por %p53, %p54
      %p56 = scmp.ne.s32.totalorder %s42, %s43
      %p57 = scmp.eq.s32.totalorder %s23, 1
      %p58 = por %p56, %p57
      %p60 = scmp.ne.s32.totalorder %s43, %s59
      %p61 = scmp.eq.s32.totalorder %s23, 0
      %p62 = por %p60, %p61
      %s64 = sadd.s32 %s63, 1
      %p67 = scmp.eq.s32.totalorder %s17, 1
      %p68 = scmp.ne.s32.totalorder %s63, %s65
      %p69 = scmp.eq.s32.totalorder %s17, 0
      %p70 = por %p68, %p69
      %p71 = scmp.ne.s32.totalorder %s63, %s65
      %p72 = scmp.eq.s32.totalorder %s22, 1
      %p73 = por %p71, %p72
      %p74 = scmp.ne.s32.totalorder %s65, %s66
      %p75 = scmp.eq.s32.totalorder %s22, 0
      %p76 = por %p74, %p75
      %p77 = scmp.ne.s32.totalorder %s65, %s66
      %p78 = scmp.eq.s32.totalorder %s23, 1
      %p79 = por %p77, %p78
      %p81 = scmp.ne.s32.totalorder %s66, %s80
      %p82 = scmp.eq.s32.totalorder %s23, 0
      %p83 = por %p81, %p82
      %s85 = sadd.s32 %s84, 1
      %p88 = scmp.eq.s32.totalorder %s17, 1
      %p89 = scmp.ne.s32.totalorder %s84, %s86
      %p90 = scmp.eq.s32.totalorder %s17, 0
      %p91 = por %p89, %p90
      %p92 = scmp.ne.s32.totalorder %s84, %s86
      %p93 = scmp.eq.s32.totalorder %s22, 1
      %p94 = por %p92, %p93
      %p95 = scmp.ne.s32.totalorder %s86, %s87
      %p96 = scmp.eq.s32.totalorder %s22, 0
      %p97 = por %p95, %p96
      %p98 = scmp.ne.s32.totalorder %s86, %s87
      %p99 = scmp.eq.s32.totalorder %s23, 1
      %p100 = por %p98, %p99
      %p102 = scmp.ne.s32.totalorder %s87, %s101
      %p103 = scmp.eq.s32.totalorder %s23, 0
      %p104 = por %p102, %p103
      %s106 = sadd.s32 %s105, 1
      %p109 = scmp.eq.s32.totalorder %s17, 1
      %p110 = scmp.ne.s32.totalorder %s105, %s107
      %p111 = scmp.eq.s32.totalorder %s17, 0
      %p112 = por %p110, %p111
      %p113 = scmp.ne.s32.totalorder %s105, %s107
      %p114 = scmp.eq.s32.totalorder %s22, 1
      %p115 = por %p113, %p114
      %p116 = scmp.ne.s32.totalorder %s107, %s108
      %p117 = scmp.eq.s32.totalorder %s22, 0
      %p118 = por %p116, %p117
      %p119 = scmp.ne.s32.totalorder %s107, %s108
      %p120 = scmp.eq.s32.totalorder %s23, 1
      %p121 = por %p119, %p120
      %p123 = scmp.ne.s32.totalorder %s108, %s122
      %p124 = scmp.eq.s32.totalorder %s23, 0
      %p125 = por %p123, %p124
      %s127 = sadd.s32 %s126, 1
      %p130 = scmp.eq.s32.totalorder %s17, 1
      %p131 = scmp.ne.s32.totalorder %s126, %s128
      %p132 = scmp.eq.s32.totalorder %s17, 0
      %p133 = por %p131, %p132
      %p134 = scmp.ne.s32.totalorder %s126, %s128
      %p135 = scmp.eq.s32.totalorder %s22, 1
      %p136 = por %p134, %p135
      %p137 = scmp.ne.s32.totalorder %s128, %s129
      %p138 = scmp.eq.s32.totalorder %s22, 0
      %p139 = por %p137, %p138
      %p140 = scmp.ne.s32.totalorder %s128, %s129
      %p141 = scmp.eq.s32.totalorder %s23, 1
      %p142 = por %p140, %p141
      %p144 = scmp.ne.s32.totalorder %s129, %s143
      %p145 = scmp.eq.s32.totalorder %s23, 0
      %p146 = por %p144, %p145
      %s148 = sadd.s32 %s147, 1
      %p151 = scmp.eq.s32.totalorder %s17, 1
      %p152 = scmp.ne.s32.totalorder %s147, %s149
      %p153 = scmp.eq.s32.totalorder %s17, 0
      %p154 = por %p152, %p153
      %p155 = scmp.ne.s32.totalorder %s147, %s149
      %p156 = scmp.eq.s32.totalorder %s22, 1
      %p157 = por %p155, %p156
      %p158 = scmp.ne.s32.totalorder %s149, %s150
      %p159 = scmp.eq.s32.totalorder %s22, 0
      %p160 = por %p158, %p159
      %p161 = scmp.ne.s32.totalorder %s149, %s150
      %p162 = scmp.eq.s32.totalorder %s23, 1
      %p163 = por %p161, %p162
      %p165 = scmp.ne.s32.totalorder %s150, %s164
      %p166 = scmp.eq.s32.totalorder %s23, 0
      %p167 = por %p165, %p166
      %s169 = sadd.s32 %s168, 1
      %p172 = scmp.eq.s32.totalorder %s17, 1
      %p173 = scmp.ne.s32.totalorder %s168, %s170
      %p174 = scmp.eq.s32.totalorder %s17, 0
      %p175 = por %p173, %p174
      %p176 = scmp.ne.s32.totalorder %s168, %s170
      %p177 = scmp.eq.s32.totalorder %s22, 1
      %p178 = por %p176, %p177
      %p179 = scmp.ne.s32.totalorder %s170, %s171
      %p180 = scmp.eq.s32.totalorder %s22, 0
      %p181 = por %p179, %p180
      %p182 = scmp.ne.s32.totalorder %s170, %s171
      %p183 = scmp.eq.s32.totalorder %s23, 1
      %p184 = por %p182, %p183
      %p186 = scmp.ne.s32.totalorder %s171, %s185
      %p187 = scmp.eq.s32.totalorder %s23, 0
      %p188 = por %p186, %p187
      %s190 = sadd.s32 %s189, 1
      %p193 = scmp.eq.s32.totalorder %s17, 1
      %p194 = scmp.ne.s32.totalorder %s189, %s191
      %p195 = scmp.eq.s32.totalorder %s17, 0
      %p196 = por %p194, %p195
      %p197 = scmp.ne.s32.totalorder %s189, %s191
      %p198 = scmp.eq.s32.totalorder %s22, 1
      %p199 = por %p197, %p198
      %p200 = scmp.ne.s32.totalorder %s191, %s192
      %p201 = scmp.eq.s32.totalorder %s22, 0
      %p202 = por %p200, %p201
      %p203 = scmp.ne.s32.totalorder %s191, %s192
      %p204 = scmp.eq.s32.totalorder %s23, 1
      %p205 = por %p203, %p204
      %p207 = scmp.ne.s32.totalorder %s192, %s206
      %p208 = scmp.eq.s32.totalorder %s23, 0
      %p209 = por %p207, %p208
      %s210 = ssub.s32 %s24, %s36
      %s211 = ssub.s32 %s25, %s32
      %s212 = sor.u32 %s210, %s211
      %p213 = scmp.eq.s32.totalorder %s212, 0
      %s215 = sadd.s32 %s214, 1
      %s216 = scalar_select %p213, %s214, %s215
      %p219 = pneg %p213
      %p220 = scmp.eq.s32.totalorder %s17, 1
      %p221 = por %p219, %p220
      %p222 = scmp.ne.s32.totalorder %s214, %s217
      %p223 = scmp.eq.s32.totalorder %s17, 0
      %p224 = por %p222, %p223
      %p225 = scmp.ne.s32.totalorder %s214, %s217
      %p226 = scmp.eq.s32.totalorder %s22, 1
      %p227 = por %p225, %p226
      %p228 = scmp.ne.s32.totalorder %s217, %s218
      %p229 = scmp.eq.s32.totalorder %s22, 0
      %p230 = por %p228, %p229
      %p231 = scmp.ne.s32.totalorder %s217, %s218
      %p232 = scmp.eq.s32.totalorder %s23, 1
      %p233 = por %p231, %p232
      %p235 = scmp.ne.s32.totalorder %s218, %s234
      %p236 = scmp.eq.s32.totalorder %s23, 0
      %p237 = por %p235, %p236
      %p238 = scmp.le.s32.totalorder 1, %s17
      %p239 = scmp.lt.s32.totalorder %s17, 3
      %p240 = pnand %p238, %p239
      %p241 = pneg %p240
      // Predicated region
      $region9: #{tpu_custom_call.1} parent=5 // pred_check
        _
      $region10: #{tpu_custom_call.1} parent=5 // pred_check_branch
        %243 = sbr.rel (%p240) target = $region12
      $region11: #{tpu_custom_call.1} parent=5 // pred_region
        %s244 = ssub.s32 %s17, 1
        // Predicated region
        $region13: #{tpu_custom_call.1} parent=11 // pred_check
          %p245 = pneg %p76
        $region14: #{tpu_custom_call.1} parent=11 // pred_check_branch
          %247 = sbr.rel (%p245) target = $region16
        $region15: #{tpu_custom_call.1} parent=11 // pred_region
          _
        $region16: #{tpu_custom_call.1} parent=11 // pred_fallthru
          _
        // Predicated region
        $region17: #{tpu_custom_call.1} parent=11 // pred_check
          %p248 = pneg %p97
        $region18: #{tpu_custom_call.1} parent=11 // pred_check_branch
          %250 = sbr.rel (%p248) target = $region20
        $region19: #{tpu_custom_call.1} parent=11 // pred_region
          _
        $region20: #{tpu_custom_call.1} parent=11 // pred_fallthru
          _
        // Predicated region
        $region21: #{tpu_custom_call.1} parent=11 // pred_check
          %p251 = pneg %p118
        $region22: #{tpu_custom_call.1} parent=11 // pred_check_branch
          %253 = sbr.rel (%p251) target = $region24
        $region23: #{tpu_custom_call.1} parent=11 // pred_region
          _
        $region24: #{tpu_custom_call.1} parent=11 // pred_fallthru
          _
        // Predicated region
        $region25: #{tpu_custom_call.1} parent=11 // pred_check
          %p254 = pneg %p139
        $region26: #{tpu_custom_call.1} parent=11 // pred_check_branch
          %256 = sbr.rel (%p254) target = $region28
        $region27: #{tpu_custom_call.1} parent=11 // pred_region
          _
        $region28: #{tpu_custom_call.1} parent=11 // pred_fallthru
          _
        // Predicated region
        $region29: #{tpu_custom_call.1} parent=11 // pred_check
          %p257 = pneg %p160
        $region30: #{tpu_custom_call.1} parent=11 // pred_check_branch
          %259 = sbr.rel (%p257) target = $region32
        $region31: #{tpu_custom_call.1} parent=11 // pred_region
          _
        $region32: #{tpu_custom_call.1} parent=11 // pred_fallthru
          _
        // Predicated region
        $region33: #{tpu_custom_call.1} parent=11 // pred_check
          %p260 = pneg %p181
        $region34: #{tpu_custom_call.1} parent=11 // pred_check_branch
          %262 = sbr.rel (%p260) target = $region36
        $region35: #{tpu_custom_call.1} parent=11 // pred_region
          _
        $region36: #{tpu_custom_call.1} parent=11 // pred_fallthru
          _
        // Predicated region
        $region37: #{tpu_custom_call.1} parent=11 // pred_check
          %p263 = pneg %p202
        $region38: #{tpu_custom_call.1} parent=11 // pred_check_branch
          %265 = sbr.rel (%p263) target = $region40
        $region39: #{tpu_custom_call.1} parent=11 // pred_region
          _
        $region40: #{tpu_custom_call.1} parent=11 // pred_fallthru
          _
      $region12: #{tpu_custom_call.1} parent=5 // pred_fallthru
        _
      %p266 = scmp.lt.s32.totalorder %s17, 2
      // Predicated region
      $region41: #{tpu_custom_call.1} parent=5 // pred_check
        %p267 = pneg %p266
      $region42: #{tpu_custom_call.1} parent=5 // pred_check_branch
        %269 = sbr.rel (%p267) target = $region44
      $region43: #{tpu_custom_call.1} parent=5 // pred_region
        // Predicated region
        $region45: #{tpu_custom_call.1} parent=43 // pred_check
          %p270 = pneg %p49
        $region46: #{tpu_custom_call.1} parent=43 // pred_check_branch
          %272 = sbr.rel (%p270) target = $region48
        $region47: #{tpu_custom_call.1} parent=43 // pred_region
          %p273 = scmp.lt.s32.totalorder %s24, 1
          %s274 = scalar_select %p273, %s24, 1
          %s275 = smul.addr %s274, 4
          %s276 = scalar_lea.vmem %s0, %s275
        $region48: #{tpu_custom_call.1} parent=43 // pred_fallthru
          _
      $region44: #{tpu_custom_call.1} parent=5 // pred_fallthru
        _
      %p277 = scmp.le.s32.totalorder 1, %s17
      %p278 = scmp.lt.s32.totalorder %s17, 3
      %p279 = pnand %p277, %p278
      %p280 = pneg %p279
      // Predicated region
      $region49: #{tpu_custom_call.1} parent=5 // pred_check
        _
      $region50: #{tpu_custom_call.1} parent=5 // pred_check_branch
        %282 = sbr.rel (%p279) target = $region52
      $region51: #{tpu_custom_call.1} parent=5 // pred_region
        %s283 = ssub.s32 %s17, 1
        %p284 = scmp.lt.s32.totalorder %s26, 1
        %s285 = scalar_select %p284, %s26, 1
        %s286 = smul.addr %s285, 4
        %s287 = scalar_lea.vmem %s0, %s286
        %p288 = pneg %p55
        %p289 = pneg %p52
        %p290 = pneg %p76
        %p291 = pneg %p73
        %p292 = pneg %p97
        %p293 = pneg %p94
        %p294 = pneg %p118
        %p295 = pneg %p115
        %p296 = pneg %p139
        %p297 = pneg %p136
        %p298 = pneg %p160
        %p299 = pneg %p157
        %p300 = pneg %p181
        %p301 = pneg %p178
        %p302 = pneg %p202
        %p303 = pneg %p199
        %p304 = pneg %p230
        %p305 = pneg %p227
        %s306 = sand.u32 %s217, 1
        %s307 = scalar_lea.sflag [#allocation5], %s306
        %s308 = sand.u32 %s217, 1
        %s309 = smul.addr %s308, 8
        %s310 = scalar_lea.vmem [#allocation4], %s309
        %p311 = scmp.lt.s32.totalorder %s26, 1
        %s312 = scalar_select %p311, %s26, 1
        %s313 = smul.addr %s312, 4
        %s314 = scalar_lea.vmem %s0, %s313
        %v316 = vld [vmem:[%s1] sm:$0x1]
        %v317 = vld [vmem:[%s2] sm:$0x1]
        %p318 = scmp.eq.s32.totalorder %s27, 0
        // Predicated region
        $region53: #{tpu_custom_call.1} parent=51 // pred_check
          %p319 = pneg %p318
        $region54: #{tpu_custom_call.1} parent=51 // pred_check_branch
          %321 = sbr.rel (%p319) target = $region56
        $region55: #{tpu_custom_call.1} parent=51 // pred_region
          %v322 = vld [vmem:[%s314] sm:$0xf]
          %v323 = vunpack.c.l.bf16 %v322
          %vm324 = vcmask 261120
          %v325 = vsel %vm324, %v323, 0.0
          %326 = vadd.xlane.f32.xlu0 %v325
          %v327 = vpop.xlane.xlu0 %326
          %v328 = vrcp.pop 32.0
          %v329 = vmul.f32 %v327, %v328
          %v330 = vsub.f32 %v323, %v329
          %v331 = vmul.f32 %v330, %v330
          %v332 = vsel %vm324, %v331, 0.0
          %333 = vadd.xlane.f32.xlu0 %v332
          %v334 = vpop.xlane.xlu0 %333
          %v335 = vmul.f32 %v334, %v328
          %v336 = vadd.f32 %v335, 1e-05
          %v337 = vrsqrt.pop %v336
          %v338 = vmul.f32 %v330, %v337
          %v340 = vlaneseq
          %v341 = vshrl.u32 %v340, 7
          %v342 = vsub.s32 0, %v341
          %v343 = vrot.slane %v316, %v342
          %v345 = vmul.f32 %v338, %v343
          %v347 = vlaneseq
          %v348 = vshrl.u32 %v347, 7
          %v349 = vsub.s32 0, %v348
          %v350 = vrot.slane %v317, %v349
          %v352 = vadd.f32 %v345, %v350
          %v353 = vpack.c.bf16 %v352, %v352
          %v354 = vld [vmem:[%s4] sm:$0xf]
          %v355 = vld [vmem:[%s4 + $0x4] sm:$0xf]
          %v356 = vld [vmem:[%s4 + $0x8] sm:$0xf]
          %v357 = vld [vmem:[%s4 + $0xc] sm:$0xf]
          %v358 = vld [vmem:[%s4 + $0x10] sm:$0xf]
          %v359 = vld [vmem:[%s4 + $0x14] sm:$0xf]
          %v360 = vld [vmem:[%s4 + $0x18] sm:$0xf]
          %v361 = vld [vmem:[%s4 + $0x1c] sm:$0xf]
          %v370 = vunpack.c.l.b16 %v354
          %v371 = vunpack.c.l.b16 %v355
          %v372 = vunpack.c.l.b16 %v356
          %v373 = vunpack.c.l.b16 %v357
          %v374 = vunpack.c.l.b16 %v358
          %v375 = vunpack.c.l.b16 %v359
          %v376 = vunpack.c.l.b16 %v360
          %v377 = vunpack.c.l.b16 %v361
          %v378 = vpack.c.b16 %v371, %v370
          %v379 = vpack.c.b16 %v373, %v372
          %v380 = vpack.c.b16 %v375, %v374
          %v381 = vpack.c.b16 %v377, %v376
          %v383 = vsel %vm324, %v378, 0
          %v386 = vsel %vm324, %v379, 0
          %v389 = vsel %vm324, %v380, 0
          %v392 = vsel %vm324, %v381, 0
          %v395 = vsel %vm324, %v353, 0
          %397 = vmatprep.subr.bf16.mxu0 0
          %398 = vmatpush1.bf16.xpose.msra.mxu0 0
          %399 = vmatprep.subr.bf16.mxu0 0
          %400 = vmatpush1.bf16.xpose.msra.mxu0 0
          %401 = vmatprep.subr.bf16.mxu0 0
          %402 = vmatpush1.bf16.xpose.msra.mxu0 0
          %403 = vmatprep.subr.bf16.mxu0 0
          %404 = vmatpush1.bf16.xpose.msra.mxu0 0
          %405 = vmatprep.subr.bf16.mxu0 0
          %406 = vmatpush1.bf16.xpose.msra.mxu0 0
          %407 = vmatprep.subr.bf16.mxu0 0
          %408 = vmatpush1.bf16.xpose.msra.mxu0 0
          %409 = vmatprep.subr.bf16.mxu0 0
          %410 = vmatpush1.bf16.xpose.msra.mxu0 0
          %411 = vmatprep.subr.bf16.mxu0 0
          %412 = vmatpush1.bf16.xpose.msra.mxu0 %v395
          %413 = vmatprep.subr.bf16.mxu0 0
          %414 = vmatpush2.bf16.xpose.msra.mxu0 0
          %415 = vmatprep.subr.bf16.mxu0 0
          %416 = vmatpush2.bf16.xpose.msra.mxu0 0
          %417 = vmatprep.subr.bf16.mxu0 0
          %418 = vmatpush2.bf16.xpose.msra.mxu0 0
          %419 = vmatprep.subr.bf16.mxu0 0
          %420 = vmatpush2.bf16.xpose.msra.mxu0 0
          %421 = vmatprep.subr.bf16.mxu0 0
          %422 = vmatpush2.bf16.xpose.msra.mxu0 0
          %423 = vmatprep.subr.bf16.mxu0 0
          %424 = vmatpush2.bf16.xpose.msra.mxu0 0
          %425 = vmatprep.subr.bf16.mxu0 0
          %426 = vmatpush2.bf16.xpose.msra.mxu0 0
          %427 = vmatprep.subr.bf16.mxu0 0
          %428 = vmatpush2.bf16.xpose.msra.mxu0 0
          %429 = vmatprep.mubr.bf16.mxu0 0
          %430 = vmatmul.mubr.bf16.gmra.mxu0 %v383
          %v431 = vpop.f32.mrf.mxu0
          %v432 = vadd.f32 0.0, %v431
          %v433 = vpop.f32.mrf.mxu0
          %v434 = vpop.f32.mrf.mxu0
          %v435 = vadd.f32 0.0, %v434
          %v436 = vpop.f32.mrf.mxu0
          %437 = vmatprep.mubr.bf16.mxu0 0
          %438 = vmatmul.mubr.bf16.gmra.mxu0 %v386
          %v439 = vpop.f32.mrf.mxu0
          %v440 = vadd.f32 0.0, %v439
          %v441 = vpop.f32.mrf.mxu0
          %v442 = vpop.f32.mrf.mxu0
          %v443 = vadd.f32 0.0, %v442
          %v444 = vpop.f32.mrf.mxu0
          %445 = vmatprep.mubr.bf16.mxu0 0
          %446 = vmatmul.mubr.bf16.gmra.mxu0 %v389
          %v447 = vpop.f32.mrf.mxu0
          %v448 = vadd.f32 0.0, %v447
          %v449 = vpop.f32.mrf.mxu0
          %v450 = vpop.f32.mrf.mxu0
          %v451 = vadd.f32 0.0, %v450
          %v452 = vpop.f32.mrf.mxu0
          %453 = vmatprep.mubr.bf16.mxu0 0
          %454 = vmatmul.mubr.bf16.gmra.mxu0 %v392
          %v455 = vpop.f32.mrf.mxu0
          %v456 = vadd.f32 0.0, %v455
          %v457 = vpop.f32.mrf.mxu0
          %v458 = vpop.f32.mrf.mxu0
          %v459 = vadd.f32 0.0, %v458
          %v460 = vpop.f32.mrf.mxu0
          %461 = vdwg.mxu0
          %v462 = vld [vmem:[%s5] sm:$0xf]
          %v463 = vld [vmem:[%s5 + $0x4] sm:$0xf]
          %v464 = vld [vmem:[%s5 + $0x8] sm:$0xf]
          %v465 = vld [vmem:[%s5 + $0xc] sm:$0xf]
          %v466 = vld [vmem:[%s5 + $0x10] sm:$0xf]
          %v467 = vld [vmem:[%s5 + $0x14] sm:$0xf]
          %v468 = vld [vmem:[%s5 + $0x18] sm:$0xf]
          %v469 = vld [vmem:[%s5 + $0x1c] sm:$0xf]
          %v478 = vunpack.c.l.b16 %v462
          %v479 = vunpack.c.l.b16 %v463
          %v480 = vunpack.c.l.b16 %v464
          %v481 = vunpack.c.l.b16 %v465
          %v482 = vunpack.c.l.b16 %v466
          %v483 = vunpack.c.l.b16 %v467
          %v484 = vunpack.c.l.b16 %v468
          %v485 = vunpack.c.l.b16 %v469
          %v486 = vpack.c.b16 %v479, %v478
          %v487 = vpack.c.b16 %v481, %v480
          %v488 = vpack.c.b16 %v483, %v482
          %v489 = vpack.c.b16 %v485, %v484
          %v491 = vsel %vm324, %v486, 0
          %v494 = vsel %vm324, %v487, 0
          %v497 = vsel %vm324, %v488, 0
          %v500 = vsel %vm324, %v489, 0
          %502 = vmatprep.subr.bf16.mxu0 0
          %503 = vmatpush1.bf16.xpose.msra.mxu0 0
          %504 = vmatprep.subr.bf16.mxu0 0
          %505 = vmatpush1.bf16.xpose.msra.mxu0 0
          %506 = vmatprep.subr.bf16.mxu0 0
          %507 = vmatpush1.bf16.xpose.msra.mxu0 0
          %508 = vmatprep.subr.bf16.mxu0 0
          %509 = vmatpush1.bf16.xpose.msra.mxu0 0
          %510 = vmatprep.subr.bf16.mxu0 0
          %511 = vmatpush1.bf16.xpose.msra.mxu0 0
          %512 = vmatprep.subr.bf16.mxu0 0
          %513 = vmatpush1.bf16.xpose.msra.mxu0 0
          %514 = vmatprep.subr.bf16.mxu0 0
          %515 = vmatpush1.bf16.xpose.msra.mxu0 0
          %516 = vmatprep.subr.bf16.mxu0 0
          %517 = vmatpush1.bf16.xpose.msra.mxu0 %v395
          %518 = vmatprep.subr.bf16.mxu0 0
          %519 = vmatpush2.bf16.xpose.msra.mxu0 0
          %520 = vmatprep.subr.bf16.mxu0 0
          %521 = vmatpush2.bf16.xpose.msra.mxu0 0
          %522 = vmatprep.subr.bf16.mxu0 0
          %523 = vmatpush2.bf16.xpose.msra.mxu0 0
          %524 = vmatprep.subr.bf16.mxu0 0
          %525 = vmatpush2.bf16.xpose.msra.mxu0 0
          %526 = vmatprep.subr.bf16.mxu0 0
          %527 = vmatpush2.bf16.xpose.msra.mxu0 0
          %528 = vmatprep.subr.bf16.mxu0 0
          %529 = vmatpush2.bf16.xpose.msra.mxu0 0
          %530 = vmatprep.subr.bf16.mxu0 0
          %531 = vmatpush2.bf16.xpose.msra.mxu0 0
          %532 = vmatprep.subr.bf16.mxu0 0
          %533 = vmatpush2.bf16.xpose.msra.mxu0 0
          %534 = vmatprep.mubr.bf16.mxu0 0
          %535 = vmatmul.mubr.bf16.gmra.mxu0 %v491
          %v536 = vpop.f32.mrf.mxu0
          %v537 = vadd.f32 0.0, %v536
          %v538 = vpop.f32.mrf.mxu0
          %v539 = vpop.f32.mrf.mxu0
          %v540 = vadd.f32 0.0, %v539
          %v541 = vpop.f32.mrf.mxu0
          %542 = vmatprep.mubr.bf16.mxu0 0
          %543 = vmatmul.mubr.bf16.gmra.mxu0 %v494
          %v544 = vpop.f32.mrf.mxu0
          %v545 = vadd.f32 0.0, %v544
          %v546 = vpop.f32.mrf.mxu0
          %v547 = vpop.f32.mrf.mxu0
          %v548 = vadd.f32 0.0, %v547
          %v549 = vpop.f32.mrf.mxu0
          %550 = vmatprep.mubr.bf16.mxu0 0
          %551 = vmatmul.mubr.bf16.gmra.mxu0 %v497
          %v552 = vpop.f32.mrf.mxu0
          %v553 = vadd.f32 0.0, %v552
          %v554 = vpop.f32.mrf.mxu0
          %v555 = vpop.f32.mrf.mxu0
          %v556 = vadd.f32 0.0, %v555
          %v557 = vpop.f32.mrf.mxu0
          %558 = vmatprep.mubr.bf16.mxu0 0
          %559 = vmatmul.mubr.bf16.gmra.mxu0 %v500
          %v560 = vpop.f32.mrf.mxu0
          %v561 = vadd.f32 0.0, %v560
          %v562 = vpop.f32.mrf.mxu0
          %v563 = vpop.f32.mrf.mxu0
          %v564 = vadd.f32 0.0, %v563
          %v565 = vpop.f32.mrf.mxu0
          %566 = vdwg.mxu0
          %v567 = vpack.c.bf16 %v435, %v432
          %v568 = vpack.c.bf16 %v443, %v440
          %v569 = vpack.c.bf16 %v451, %v448
          %v570 = vpack.c.bf16 %v459, %v456
          %v575 = vunpack.c.l.b16 %v567
          %v576 = vunpack.c.h.b16 %v567
          %v577 = vunpack.c.l.b16 %v568
          %v578 = vunpack.c.h.b16 %v568
          %v579 = vunpack.c.l.b16 %v569
          %v580 = vunpack.c.h.b16 %v569
          %v581 = vunpack.c.l.b16 %v570
          %v582 = vunpack.c.h.b16 %v570
          %v583 = vpack.c.b16 %v575, %v575
          %v584 = vpack.c.b16 %v576, %v576
          %v585 = vpack.c.b16 %v577, %v577
          %v586 = vpack.c.b16 %v578, %v578
          %v587 = vpack.c.b16 %v579, %v579
          %v588 = vpack.c.b16 %v580, %v580
          %v589 = vpack.c.b16 %v581, %v581
          %v590 = vpack.c.b16 %v582, %v582
          %vm599 = vcmask 60416
          %600 = vst.msk [vmem:[#allocation2] sm:$0xf] %vm599, %v583
          %601 = vst.msk [vmem:[#allocation2 + $0x4] sm:$0xf] %vm599, %v584
          %602 = vst.msk [vmem:[#allocation2 + $0x8] sm:$0xf] %vm599, %v585
          %603 = vst.msk [vmem:[#allocation2 + $0xc] sm:$0xf] %vm599, %v586
          %604 = vst.msk [vmem:[#allocation2 + $0x10] sm:$0xf] %vm599, %v587
          %605 = vst.msk [vmem:[#allocation2 + $0x14] sm:$0xf] %vm599, %v588
          %606 = vst.msk [vmem:[#allocation2 + $0x18] sm:$0xf] %vm599, %v589
          %607 = vst.msk [vmem:[#allocation2 + $0x1c] sm:$0xf] %vm599, %v590
          %v608 = vpack.c.bf16 %v540, %v537
          %v609 = vpack.c.bf16 %v548, %v545
          %v610 = vpack.c.bf16 %v556, %v553
          %v611 = vpack.c.bf16 %v564, %v561
          %v616 = vunpack.c.l.b16 %v608
          %v617 = vunpack.c.h.b16 %v608
          %v618 = vunpack.c.l.b16 %v609
          %v619 = vunpack.c.h.b16 %v609
          %v620 = vunpack.c.l.b16 %v610
          %v621 = vunpack.c.h.b16 %v610
          %v622 = vunpack.c.l.b16 %v611
          %v623 = vunpack.c.h.b16 %v611
          %v624 = vpack.c.b16 %v616, %v616
          %v625 = vpack.c.b16 %v617, %v617
          %v626 = vpack.c.b16 %v618, %v618
          %v627 = vpack.c.b16 %v619, %v619
          %v628 = vpack.c.b16 %v620, %v620
          %v629 = vpack.c.b16 %v621, %v621
          %v630 = vpack.c.b16 %v622, %v622
          %v631 = vpack.c.b16 %v623, %v623
          %640 = vst.msk [vmem:[#allocation3] sm:$0xf] %vm599, %v624
          %641 = vst.msk [vmem:[#allocation3 + $0x4] sm:$0xf] %vm599, %v625
          %642 = vst.msk [vmem:[#allocation3 + $0x8] sm:$0xf] %vm599, %v626
          %643 = vst.msk [vmem:[#allocation3 + $0xc] sm:$0xf] %vm599, %v627
          %644 = vst.msk [vmem:[#allocation3 + $0x10] sm:$0xf] %vm599, %v628
          %645 = vst.msk [vmem:[#allocation3 + $0x14] sm:$0xf] %vm599, %v629
          %646 = vst.msk [vmem:[#allocation3 + $0x18] sm:$0xf] %vm599, %v630
          %647 = vst.msk [vmem:[#allocation3 + $0x1c] sm:$0xf] %vm599, %v631
        $region56: #{tpu_custom_call.1} parent=51 // pred_fallthru
          _
        %s648 = smul.u32 %s27, 8
        %s649 = sshra.s32 %s648, 3
        %s650 = sand.u32 %s648, 7
        %s651 = smul.addr %s649, 4
        %s652 = scalar_lea.vmem %s314, %s651
        %v653 = vld [vmem:[%s652] sm:$0xf]
        %v654 = vunpack.c.l.bf16 %v653
        %vm655 = vcmask 261120
        %v656 = vsel %vm655, %v654, 0.0
        %657 = vadd.xlane.f32.xlu0 %v656
        %v658 = vpop.xlane.xlu0 %657
        %v659 = vrcp.pop 32.0
        %v660 = vmul.f32 %v658, %v659
        %v661 = vsub.f32 %v654, %v660
        %v662 = vmul.f32 %v661, %v661
        %v663 = vsel %vm655, %v662, 0.0
        %664 = vadd.xlane.f32.xlu0 %v663
        %v665 = vpop.xlane.xlu0 %664
        %v666 = vmul.f32 %v665, %v659
        %v667 = vadd.f32 %v666, 1e-05
        %v668 = vrsqrt.pop %v667
        %v669 = vmul.f32 %v661, %v668
        %v671 = vlaneseq
        %v672 = vshrl.u32 %v671, 7
        %v673 = vsub.s32 0, %v672
        %v674 = vrot.slane %v316, %v673
        %v676 = vmul.f32 %v669, %v674
        %v678 = vlaneseq
        %v679 = vshrl.u32 %v678, 7
        %v680 = vsub.s32 0, %v679
        %v681 = vrot.slane %v317, %v680
        %v683 = vadd.f32 %v676, %v681
        %v684 = vpack.c.bf16 %v683, %v683
        %v685 = vld [vmem:[%s3] sm:$0xf]
        %v686 = vld [vmem:[%s3 + $0x4] sm:$0xf]
        %v687 = vld [vmem:[%s3 + $0x8] sm:$0xf]
        %v688 = vld [vmem:[%s3 + $0xc] sm:$0xf]
        %v693 = vunpack.c.l.b16 %v685
        %v694 = vunpack.c.l.b16 %v686
        %v695 = vunpack.c.l.b16 %v687
        %v696 = vunpack.c.l.b16 %v688
        %v697 = vpack.c.b16 %v694, %v693
        %v698 = vpack.c.b16 %v696, %v695
        %v702 = vsel %vm655, %v684, 0
        %704 = vmatprep.subr.bf16.mxu0 0
        %705 = vmatpush1.bf16.msra.mxu0 0
        %706 = vmatprep.subr.bf16.mxu0 0
        %707 = vmatpush1.bf16.msra.mxu0 0
        %708 = vmatprep.subr.bf16.mxu0 0
        %709 = vmatpush1.bf16.msra.mxu0 0
        %710 = vmatprep.subr.bf16.mxu0 0
        %711 = vmatpush1.bf16.msra.mxu0 0
        %712 = vmatprep.subr.bf16.mxu0 0
        %713 = vmatpush1.bf16.msra.mxu0 0
        %714 = vmatprep.subr.bf16.mxu0 0
        %715 = vmatpush1.bf16.msra.mxu0 0
        %716 = vmatprep.subr.bf16.mxu0 0
        %717 = vmatpush1.bf16.msra.mxu0 %v698
        %718 = vmatprep.subr.bf16.mxu0 0
        %719 = vmatpush1.bf16.msra.mxu0 %v697
        %720 = vmatprep.subr.bf16.mxu0 0
        %721 = vmatpush2.bf16.msra.mxu0 0
        %722 = vmatprep.subr.bf16.mxu0 0
        %723 = vmatpush2.bf16.msra.mxu0 0
        %724 = vmatprep.subr.bf16.mxu0 0
        %725 = vmatpush2.bf16.msra.mxu0 0
        %726 = vmatprep.subr.bf16.mxu0 0
        %727 = vmatpush2.bf16.msra.mxu0 0
        %728 = vmatprep.subr.bf16.mxu0 0
        %729 = vmatpush2.bf16.msra.mxu0 0
        %730 = vmatprep.subr.bf16.mxu0 0
        %731 = vmatpush2.bf16.msra.mxu0 0
        %732 = vmatprep.subr.bf16.mxu0 0
        %733 = vmatpush2.bf16.msra.mxu0 0
        %734 = vmatprep.subr.bf16.mxu0 0
        %735 = vmatpush2.bf16.msra.mxu0 0
        %736 = vmatprep.mubr.bf16.mxu0 0
        %737 = vmatmul.mubr.bf16.gmra.mxu0 %v702
        %v738 = vpop.f32.mrf.mxu0
        %v739 = vadd.f32 0.0, %v738
        %v740 = vpop.f32.mrf.mxu0
        %v741 = vpop.f32.mrf.mxu0
        %v742 = vpop.f32.mrf.mxu0
        %743 = vdwg.mxu0
        %745 = vrot.lane.b32.xlu0 %v739, 112
        %v746 = vpop.permute.xlu0 %745
        %748 = vrot.lane.b32.xlu0 %v739, 96
        %v749 = vpop.permute.xlu0 %748
        %751 = vrot.lane.b32.xlu0 %v739, 80
        %v752 = vpop.permute.xlu0 %751
        %v754 = vcombine.low %v739, %v749
        %v755 = vcombine.high %v739, %v749
        %v757 = vunpack.c.l.s4 1983009808
        %v758 = vunpack.c.0.s8 %v757
        %v759 = vlaneseq
        %v760 = vshrl.u32 %v759, 7
        %v761 = vsub.s32 %v758, %v760
        %v762 = vrot.slane %v754, %v761
        %v764 = vunpack.c.l.s4 1983009808
        %v765 = vunpack.c.0.s8 %v764
        %v766 = vlaneseq
        %v767 = vshrl.u32 %v766, 7
        %v768 = vsub.s32 %v765, %v767
        %v769 = vrot.slane %v755, %v768
        %v770 = vcombine.low %v746, %v752
        %v771 = vcombine.high %v746, %v752
        %v773 = vunpack.c.l.s4 1983009808
        %v774 = vunpack.c.0.s8 %v773
        %v775 = vlaneseq
        %v776 = vshrl.u32 %v775, 7
        %v777 = vsub.s32 %v774, %v776
        %v778 = vrot.slane %v770, %v777
        %v780 = vunpack.c.l.s4 1983009808
        %v781 = vunpack.c.0.s8 %v780
        %v782 = vlaneseq
        %v783 = vshrl.u32 %v782, 7
        %v784 = vsub.s32 %v781, %v783
        %v785 = vrot.slane %v771, %v784
        %v786 = vcombine.low %v762, %v778
        %v787 = vcombine.high %v762, %v778
        %v789 = vunpack.c.l.s4 1934713408
        %v790 = vunpack.c.0.s8 %v789
        %v791 = vlaneseq
        %v792 = vshrl.u32 %v791, 7
        %v793 = vsub.s32 %v790, %v792
        %v794 = vrot.slane %v786, %v793
        %v796 = vunpack.c.l.s4 1934713408
        %v797 = vunpack.c.0.s8 %v796
        %v798 = vlaneseq
        %v799 = vshrl.u32 %v798, 7
        %v800 = vsub.s32 %v797, %v799
        %v801 = vrot.slane %v787, %v800
        %v802 = vcombine.low %v769, %v785
        %v803 = vcombine.high %v769, %v785
        %v805 = vunpack.c.l.s4 1934713408
        %v806 = vunpack.c.0.s8 %v805
        %v807 = vlaneseq
        %v808 = vshrl.u32 %v807, 7
        %v809 = vsub.s32 %v806, %v808
        %v810 = vrot.slane %v802, %v809
        %v812 = vunpack.c.l.s4 1934713408
        %v813 = vunpack.c.0.s8 %v812
        %v814 = vlaneseq
        %v815 = vshrl.u32 %v814, 7
        %v816 = vsub.s32 %v813, %v815
        %v817 = vrot.slane %v803, %v816
        %v818 = vcombine.high %v794, 0.0
        %v819 = vcombine.high %v801, 0.0
        %v820 = vcombine.high %v810, 0.0
        %v821 = vcombine.high %v817, 0.0
        %v822 = vcombine.low %v794, %v801
        %v824 = vunpack.c.l.s4 1983009808
        %v825 = vunpack.c.0.s8 %v824
        %v826 = vlaneseq
        %v827 = vshrl.u32 %v826, 7
        %v828 = vsub.s32 %v825, %v827
        %v829 = vrot.slane %v822, %v828
        %v830 = vcombine.low %v818, %v819
        %v832 = vunpack.c.l.s4 1983009808
        %v833 = vunpack.c.0.s8 %v832
        %v834 = vlaneseq
        %v835 = vshrl.u32 %v834, 7
        %v836 = vsub.s32 %v833, %v835
        %v837 = vrot.slane %v830, %v836
        %v838 = vcombine.low %v810, %v817
        %v840 = vunpack.c.l.s4 1983009808
        %v841 = vunpack.c.0.s8 %v840
        %v842 = vlaneseq
        %v843 = vshrl.u32 %v842, 7
        %v844 = vsub.s32 %v841, %v843
        %v845 = vrot.slane %v838, %v844
        %v846 = vcombine.low %v820, %v821
        %v848 = vunpack.c.l.s4 1983009808
        %v849 = vunpack.c.0.s8 %v848
        %v850 = vlaneseq
        %v851 = vshrl.u32 %v850, 7
        %v852 = vsub.s32 %v849, %v851
        %v853 = vrot.slane %v846, %v852
        %v854 = vcombine.low %v829, %v837
        %v855 = vcombine.high %v829, %v837
        %v857 = vunpack.c.l.s4 1934713408
        %v858 = vunpack.c.0.s8 %v857
        %v859 = vlaneseq
        %v860 = vshrl.u32 %v859, 7
        %v861 = vsub.s32 %v858, %v860
        %v862 = vrot.slane %v854, %v861
        %v864 = vunpack.c.l.s4 1934713408
        %v865 = vunpack.c.0.s8 %v864
        %v866 = vlaneseq
        %v867 = vshrl.u32 %v866, 7
        %v868 = vsub.s32 %v865, %v867
        %v869 = vrot.slane %v855, %v868
        %v870 = vcombine.low %v845, %v853
        %v871 = vcombine.high %v845, %v853
        %v873 = vunpack.c.l.s4 1934713408
        %v874 = vunpack.c.0.s8 %v873
        %v875 = vlaneseq
        %v876 = vshrl.u32 %v875, 7
        %v877 = vsub.s32 %v874, %v876
        %v878 = vrot.slane %v870, %v877
        %v880 = vunpack.c.l.s4 1934713408
        %v881 = vunpack.c.0.s8 %v880
        %v882 = vlaneseq
        %v883 = vshrl.u32 %v882, 7
        %v884 = vsub.s32 %v881, %v883
        %v885 = vrot.slane %v871, %v884
        %v886 = vcombine.low %v862, %v878
        %v887 = vcombine.high %v862, %v878
        %v888 = vcombine.low %v869, %v885
        %v889 = vcombine.high %v869, %v885
        %v890 = vpack.c.bf16 %v886, %v886
        %v891 = vpack.c.bf16 %v887, %v887
        %v892 = vpack.c.bf16 %v888, %v888
        %v893 = vpack.c.bf16 %v889, %v889
        %v894 = vld [vmem:[#allocation2] sm:$0xf]
        %v895 = vld [vmem:[#allocation2 + $0x4] sm:$0xf]
        %v896 = vld [vmem:[#allocation2 + $0x8] sm:$0xf]
        %v897 = vld [vmem:[#allocation2 + $0xc] sm:$0xf]
        %v898 = vld [vmem:[#allocation2 + $0x10] sm:$0xf]
        %v899 = vld [vmem:[#allocation2 + $0x14] sm:$0xf]
        %v900 = vld [vmem:[#allocation2 + $0x18] sm:$0xf]
        %v901 = vld [vmem:[#allocation2 + $0x1c] sm:$0xf]
        %v902 = vld [vmem:[#allocation3] sm:$0xf]
        %v903 = vld [vmem:[#allocation3 + $0x4] sm:$0xf]
        %v904 = vld [vmem:[#allocation3 + $0x8] sm:$0xf]
        %v905 = vld [vmem:[#allocation3 + $0xc] sm:$0xf]
        %v906 = vld [vmem:[#allocation3 + $0x10] sm:$0xf]
        %v907 = vld [vmem:[#allocation3 + $0x14] sm:$0xf]
        %v908 = vld [vmem:[#allocation3 + $0x18] sm:$0xf]
        %v909 = vld [vmem:[#allocation3 + $0x1c] sm:$0xf]
        %v912 = vunpack.c.l.b16 %v894
        %v913 = vunpack.c.l.b16 %v895
        %v914 = vpack.c.b16 %v913, %v912
        %vm916 = vcmask 130048
        %v918 = vsel %vm916, %v890, 0
        %920 = vmatprep.subr.bf16.mxu0 0
        %921 = vmatpush1.bf16.msra.mxu0 0
        %922 = vmatprep.subr.bf16.mxu0 0
        %923 = vmatpush1.bf16.msra.mxu0 0
        %924 = vmatprep.subr.bf16.mxu0 0
        %925 = vmatpush1.bf16.msra.mxu0 0
        %926 = vmatprep.subr.bf16.mxu0 0
        %927 = vmatpush1.bf16.msra.mxu0 0
        %928 = vmatprep.subr.bf16.mxu0 0
        %929 = vmatpush1.bf16.msra.mxu0 0
        %930 = vmatprep.subr.bf16.mxu0 0
        %931 = vmatpush1.bf16.msra.mxu0 0
        %932 = vmatprep.subr.bf16.mxu0 0
        %933 = vmatpush1.bf16.msra.mxu0 0
        %934 = vmatprep.subr.bf16.mxu0 0
        %935 = vmatpush1.bf16.msra.mxu0 %v914
        %936 = vmatprep.subr.bf16.mxu0 0
        %937 = vmatpush2.bf16.msra.mxu0 0
        %938 = vmatprep.subr.bf16.mxu0 0
        %939 = vmatpush2.bf16.msra.mxu0 0
        %940 = vmatprep.subr.bf16.mxu0 0
        %941 = vmatpush2.bf16.msra.mxu0 0
        %942 = vmatprep.subr.bf16.mxu0 0
        %943 = vmatpush2.bf16.msra.mxu0 0
        %944 = vmatprep.subr.bf16.mxu0 0
        %945 = vmatpush2.bf16.msra.mxu0 0
        %946 = vmatprep.subr.bf16.mxu0 0
        %947 = vmatpush2.bf16.msra.mxu0 0
        %948 = vmatprep.subr.bf16.mxu0 0
        %949 = vmatpush2.bf16.msra.mxu0 0
        %950 = vmatprep.subr.bf16.mxu0 0
        %951 = vmatpush2.bf16.msra.mxu0 0
        %952 = vmatprep.mubr.bf16.mxu0 0
        %953 = vmatmul.mubr.bf16.gmra.mxu0 %v918
        %v954 = vpop.f32.mrf.mxu0
        %v955 = vadd.f32 0.0, %v954
        %v956 = vpop.f32.mrf.mxu0
        %v957 = vpop.f32.mrf.mxu0
        %v958 = vpop.f32.mrf.mxu0
        %959 = vdwg.mxu0
        %v962 = vunpack.c.l.b16 %v896
        %v963 = vunpack.c.l.b16 %v897
        %v964 = vpack.c.b16 %v963, %v962
        %v967 = vsel %vm916, %v891, 0
        %969 = vmatprep.subr.bf16.mxu0 0
        %970 = vmatpush1.bf16.msra.mxu0 0
        %971 = vmatprep.subr.bf16.mxu0 0
        %972 = vmatpush1.bf16.msra.mxu0 0
        %973 = vmatprep.subr.bf16.mxu0 0
        %974 = vmatpush1.bf16.msra.mxu0 0
        %975 = vmatprep.subr.bf16.mxu0 0
        %976 = vmatpush1.bf16.msra.mxu0 0
        %977 = vmatprep.subr.bf16.mxu0 0
        %978 = vmatpush1.bf16.msra.mxu0 0
        %979 = vmatprep.subr.bf16.mxu0 0
        %980 = vmatpush1.bf16.msra.mxu0 0
        %981 = vmatprep.subr.bf16.mxu0 0
        %982 = vmatpush1.bf16.msra.mxu0 0
        %983 = vmatprep.subr.bf16.mxu0 0
        %984 = vmatpush1.bf16.msra.mxu0 %v964
        %985 = vmatprep.subr.bf16.mxu0 0
        %986 = vmatpush2.bf16.msra.mxu0 0
        %987 = vmatprep.subr.bf16.mxu0 0
        %988 = vmatpush2.bf16.msra.mxu0 0
        %989 = vmatprep.subr.bf16.mxu0 0
        %990 = vmatpush2.bf16.msra.mxu0 0
        %991 = vmatprep.subr.bf16.mxu0 0
        %992 = vmatpush2.bf16.msra.mxu0 0
        %993 = vmatprep.subr.bf16.mxu0 0
        %994 = vmatpush2.bf16.msra.mxu0 0
        %995 = vmatprep.subr.bf16.mxu0 0
        %996 = vmatpush2.bf16.msra.mxu0 0
        %997 = vmatprep.subr.bf16.mxu0 0
        %998 = vmatpush2.bf16.msra.mxu0 0
        %999 = vmatprep.subr.bf16.mxu0 0
        %1000 = vmatpush2.bf16.msra.mxu0 0
        %1001 = vmatprep.mubr.bf16.mxu0 0
        %1002 = vmatmul.mubr.bf16.gmra.mxu0 %v967
        %v1003 = vpop.f32.mrf.mxu0
        %v1004 = vadd.f32 0.0, %v1003
        %v1005 = vpop.f32.mrf.mxu0
        %v1006 = vpop.f32.mrf.mxu0
        %v1007 = vpop.f32.mrf.mxu0
        %1008 = vdwg.mxu0
        %v1011 = vunpack.c.l.b16 %v898
        %v1012 = vunpack.c.l.b16 %v899
        %v1013 = vpack.c.b16 %v1012, %v1011
        %v1016 = vsel %vm916, %v892, 0
        %1018 = vmatprep.subr.bf16.mxu0 0
        %1019 = vmatpush1.bf16.msra.mxu0 0
        %1020 = vmatprep.subr.bf16.mxu0 0
        %1021 = vmatpush1.bf16.msra.mxu0 0
        %1022 = vmatprep.subr.bf16.mxu0 0
        %1023 = vmatpush1.bf16.msra.mxu0 0
        %1024 = vmatprep.subr.bf16.mxu0 0
        %1025 = vmatpush1.bf16.msra.mxu0 0
        %1026 = vmatprep.subr.bf16.mxu0 0
        %1027 = vmatpush1.bf16.msra.mxu0 0
        %1028 = vmatprep.subr.bf16.mxu0 0
        %1029 = vmatpush1.bf16.msra.mxu0 0
        %1030 = vmatprep.subr.bf16.mxu0 0
        %1031 = vmatpush1.bf16.msra.mxu0 0
        %1032 = vmatprep.subr.bf16.mxu0 0
        %1033 = vmatpush1.bf16.msra.mxu0 %v1013
        %1034 = vmatprep.subr.bf16.mxu0 0
        %1035 = vmatpush2.bf16.msra.mxu0 0
        %1036 = vmatprep.subr.bf16.mxu0 0
        %1037 = vmatpush2.bf16.msra.mxu0 0
        %1038 = vmatprep.subr.bf16.mxu0 0
        %1039 = vmatpush2.bf16.msra.mxu0 0
        %1040 = vmatprep.subr.bf16.mxu0 0
        %1041 = vmatpush2.bf16.msra.mxu0 0
        %1042 = vmatprep.subr.bf16.mxu0 0
        %1043 = vmatpush2.bf16.msra.mxu0 0
        %1044 = vmatprep.subr.bf16.mxu0 0
        %1045 = vmatpush2.bf16.msra.mxu0 0
        %1046 = vmatprep.subr.bf16.mxu0 0
        %1047 = vmatpush2.bf16.msra.mxu0 0
        %1048 = vmatprep.subr.bf16.mxu0 0
        %1049 = vmatpush2.bf16.msra.mxu0 0
        %1050 = vmatprep.mubr.bf16.mxu0 0
        %1051 = vmatmul.mubr.bf16.gmra.mxu0 %v1016
        %v1052 = vpop.f32.mrf.mxu0
        %v1053 = vadd.f32 0.0, %v1052
        %v1054 = vpop.f32.mrf.mxu0
        %v1055 = vpop.f32.mrf.mxu0
        %v1056 = vpop.f32.mrf.mxu0
        %1057 = vdwg.mxu0
        %v1060 = vunpack.c.l.b16 %v900
        %v1061 = vunpack.c.l.b16 %v901
        %v1062 = vpack.c.b16 %v1061, %v1060
        %v1065 = vsel %vm916, %v893, 0
        %1067 = vmatprep.subr.bf16.mxu0 0
        %1068 = vmatpush1.bf16.msra.mxu0 0
        %1069 = vmatprep.subr.bf16.mxu0 0
        %1070 = vmatpush1.bf16.msra.mxu0 0
        %1071 = vmatprep.subr.bf16.mxu0 0
        %1072 = vmatpush1.bf16.msra.mxu0 0
        %1073 = vmatprep.subr.bf16.mxu0 0
        %1074 = vmatpush1.bf16.msra.mxu0 0
        %1075 = vmatprep.subr.bf16.mxu0 0
        %1076 = vmatpush1.bf16.msra.mxu0 0
        %1077 = vmatprep.subr.bf16.mxu0 0
        %1078 = vmatpush1.bf16.msra.mxu0 0
        %1079 = vmatprep.subr.bf16.mxu0 0
        %1080 = vmatpush1.bf16.msra.mxu0 0
        %1081 = vmatprep.subr.bf16.mxu0 0
        %1082 = vmatpush1.bf16.msra.mxu0 %v1062
        %1083 = vmatprep.subr.bf16.mxu0 0
        %1084 = vmatpush2.bf16.msra.mxu0 0
        %1085 = vmatprep.subr.bf16.mxu0 0
        %1086 = vmatpush2.bf16.msra.mxu0 0
        %1087 = vmatprep.subr.bf16.mxu0 0
        %1088 = vmatpush2.bf16.msra.mxu0 0
        %1089 = vmatprep.subr.bf16.mxu0 0
        %1090 = vmatpush2.bf16.msra.mxu0 0
        %1091 = vmatprep.subr.bf16.mxu0 0
        %1092 = vmatpush2.bf16.msra.mxu0 0
        %1093 = vmatprep.subr.bf16.mxu0 0
        %1094 = vmatpush2.bf16.msra.mxu0 0
        %1095 = vmatprep.subr.bf16.mxu0 0
        %1096 = vmatpush2.bf16.msra.mxu0 0
        %1097 = vmatprep.subr.bf16.mxu0 0
        %1098 = vmatpush2.bf16.msra.mxu0 0
        %1099 = vmatprep.mubr.bf16.mxu0 0
        %1100 = vmatmul.mubr.bf16.gmra.mxu0 %v1065
        %v1101 = vpop.f32.mrf.mxu0
        %v1102 = vadd.f32 0.0, %v1101
        %v1103 = vpop.f32.mrf.mxu0
        %v1104 = vpop.f32.mrf.mxu0
        %v1105 = vpop.f32.mrf.mxu0
        %1106 = vdwg.mxu0
        %vm1107 = vcmask 64512
        %v1108 = vsel %vm1107, %v955, -inf
        %1109 = vmax.xlane.f32.xlu0 %v1108
        %v1110 = vpop.xlane.xlu0 %1109
        %v1111 = vsel %vm1107, %v1004, -inf
        %1112 = vmax.xlane.f32.xlu0 %v1111
        %v1113 = vpop.xlane.xlu0 %1112
        %v1114 = vsel %vm1107, %v1053, -inf
        %1115 = vmax.xlane.f32.xlu0 %v1114
        %v1116 = vpop.xlane.xlu0 %1115
        %v1117 = vsel %vm1107, %v1102, -inf
        %1118 = vmax.xlane.f32.xlu0 %v1117
        %v1119 = vpop.xlane.xlu0 %1118
        %v1120 = vsub.f32 %v955, %v1110
        %v1121 = vsub.f32 %v1004, %v1113
        %v1122 = vsub.f32 %v1053, %v1116
        %v1123 = vsub.f32 %v1102, %v1119
        %v1124 = vmul.f32 %v1120, 1.442695
        %v1125 = vpow.pop %v1124
        %v1126 = vmul.f32 %v1121, 1.442695
        %v1127 = vpow.pop %v1126
        %v1128 = vmul.f32 %v1122, 1.442695
        %v1129 = vpow.pop %v1128
        %v1130 = vmul.f32 %v1123, 1.442695
        %v1131 = vpow.pop %v1130
        %v1132 = vsel %vm1107, %v1125, 0.0
        %1133 = vadd.xlane.f32.xlu0 %v1132
        %v1134 = vpop.xlane.xlu0 %1133
        %v1135 = vsel %vm1107, %v1127, 0.0
        %1136 = vadd.xlane.f32.xlu0 %v1135
        %v1137 = vpop.xlane.xlu0 %1136
        %v1138 = vsel %vm1107, %v1129, 0.0
        %1139 = vadd.xlane.f32.xlu0 %v1138
        %v1140 = vpop.xlane.xlu0 %1139
        %v1141 = vsel %vm1107, %v1131, 0.0
        %1142 = vadd.xlane.f32.xlu0 %v1141
        %v1143 = vpop.xlane.xlu0 %1142
        %v1144 = vpack.c.bf16 %v1125, %v1125
        %v1145 = vpack.c.bf16 %v1127, %v1127
        %v1146 = vpack.c.bf16 %v1129, %v1129
        %v1147 = vpack.c.bf16 %v1131, %v1131
        %v1150 = vunpack.c.l.b16 %v902
        %v1151 = vunpack.c.l.b16 %v903
        %v1152 = vpack.c.b16 %v1151, %v1150
        %v1154 = vsel %vm1107, %v1152, 0
        %v1157 = vsel %vm1107, %v1144, 0
        %1159 = vmatprep.subr.bf16.mxu0 0
        %1160 = vmatpush1.bf16.xpose.msra.mxu0 0
        %1161 = vmatprep.subr.bf16.mxu0 0
        %1162 = vmatpush1.bf16.xpose.msra.mxu0 0
        %1163 = vmatprep.subr.bf16.mxu0 0
        %1164 = vmatpush1.bf16.xpose.msra.mxu0 0
        %1165 = vmatprep.subr.bf16.mxu0 0
        %1166 = vmatpush1.bf16.xpose.msra.mxu0 0
        %1167 = vmatprep.subr.bf16.mxu0 0
        %1168 = vmatpush1.bf16.xpose.msra.mxu0 0
        %1169 = vmatprep.subr.bf16.mxu0 0
        %1170 = vmatpush1.bf16.xpose.msra.mxu0 0
        %1171 = vmatprep.subr.bf16.mxu0 0
        %1172 = vmatpush1.bf16.xpose.msra.mxu0 0
        %1173 = vmatprep.subr.bf16.mxu0 0
        %1174 = vmatpush1.bf16.xpose.msra.mxu0 %v1157
        %1175 = vmatprep.subr.bf16.mxu0 0
        %1176 = vmatpush2.bf16.xpose.msra.mxu0 0
        %1177 = vmatprep.subr.bf16.mxu0 0
        %1178 = vmatpush2.bf16.xpose.msra.mxu0 0
        %1179 = vmatprep.subr.bf16.mxu0 0
        %1180 = vmatpush2.bf16.xpose.msra.mxu0 0
        %1181 = vmatprep.subr.bf16.mxu0 0
        %1182 = vmatpush2.bf16.xpose.msra.mxu0 0
        %1183 = vmatprep.subr.bf16.mxu0 0
        %1184 = vmatpush2.bf16.xpose.msra.mxu0 0
        %1185 = vmatprep.subr.bf16.mxu0 0
        %1186 = vmatpush2.bf16.xpose.msra.mxu0 0
        %1187 = vmatprep.subr.bf16.mxu0 0
        %1188 = vmatpush2.bf16.xpose.msra.mxu0 0
        %1189 = vmatprep.subr.bf16.mxu0 0
        %1190 = vmatpush2.bf16.xpose.msra.mxu0 0
        %1191 = vmatprep.mubr.bf16.mxu0 0
        %1192 = vmatmul.mubr.bf16.gmra.mxu0 %v1154
        %v1193 = vpop.f32.mrf.mxu0
        %v1194 = vadd.f32 0.0, %v1193
        %v1195 = vpop.f32.mrf.mxu0
        %v1196 = vpop.f32.mrf.mxu0
        %v1197 = vadd.f32 0.0, %v1196
        %v1198 = vpop.f32.mrf.mxu0
        %1199 = vdwg.mxu0
        %v1202 = vunpack.c.l.b16 %v904
        %v1203 = vunpack.c.l.b16 %v905
        %v1204 = vpack.c.b16 %v1203, %v1202
        %v1206 = vsel %vm1107, %v1204, 0
        %v1209 = vsel %vm1107, %v1145, 0
        %1211 = vmatprep.subr.bf16.mxu0 0
        %1212 = vmatpush1.bf16.xpose.msra.mxu0 0
        %1213 = vmatprep.subr.bf16.mxu0 0
        %1214 = vmatpush1.bf16.xpose.msra.mxu0 0
        %1215 = vmatprep.subr.bf16.mxu0 0
        %1216 = vmatpush1.bf16.xpose.msra.mxu0 0
        %1217 = vmatprep.subr.bf16.mxu0 0
        %1218 = vmatpush1.bf16.xpose.msra.mxu0 0
        %1219 = vmatprep.subr.bf16.mxu0 0
        %1220 = vmatpush1.bf16.xpose.msra.mxu0 0
        %1221 = vmatprep.subr.bf16.mxu0 0
        %1222 = vmatpush1.bf16.xpose.msra.mxu0 0
        %1223 = vmatprep.subr.bf16.mxu0 0
        %1224 = vmatpush1.bf16.xpose.msra.mxu0 0
        %1225 = vmatprep.subr.bf16.mxu0 0
        %1226 = vmatpush1.bf16.xpose.msra.mxu0 %v1209
        %1227 = vmatprep.subr.bf16.mxu0 0
        %1228 = vmatpush2.bf16.xpose.msra.mxu0 0
        %1229 = vmatprep.subr.bf16.mxu0 0
        %1230 = vmatpush2.bf16.xpose.msra.mxu0 0
        %1231 = vmatprep.subr.bf16.mxu0 0
        %1232 = vmatpush2.bf16.xpose.msra.mxu0 0
        %1233 = vmatprep.subr.bf16.mxu0 0
        %1234 = vmatpush2.bf16.xpose.msra.mxu0 0
        %1235 = vmatprep.subr.bf16.mxu0 0
        %1236 = vmatpush2.bf16.xpose.msra.mxu0 0
        %1237 = vmatprep.subr.bf16.mxu0 0
        %1238 = vmatpush2.bf16.xpose.msra.mxu0 0
        %1239 = vmatprep.subr.bf16.mxu0 0
        %1240 = vmatpush2.bf16.xpose.msra.mxu0 0
        %1241 = vmatprep.subr.bf16.mxu0 0
        %1242 = vmatpush2.bf16.xpose.msra.mxu0 0
        %1243 = vmatprep.mubr.bf16.mxu0 0
        %1244 = vmatmul.mubr.bf16.gmra.mxu0 %v1206
        %v1245 = vpop.f32.mrf.mxu0
        %v1246 = vadd.f32 0.0, %v1245
        %v1247 = vpop.f32.mrf.mxu0
        %v1248 = vpop.f32.mrf.mxu0
        %v1249 = vadd.f32 0.0, %v1248
        %v1250 = vpop.f32.mrf.mxu0
        %1251 = vdwg.mxu0
        %v1254 = vunpack.c.l.b16 %v906
        %v1255 = vunpack.c.l.b16 %v907
        %v1256 = vpack.c.b16 %v1255, %v1254
        %v1258 = vsel %vm1107, %v1256, 0
        %v1261 = vsel %vm1107, %v1146, 0
        %1263 = vmatprep.subr.bf16.mxu0 0
        %1264 = vmatpush1.bf16.xpose.msra.mxu0 0
        %1265 = vmatprep.subr.bf16.mxu0 0
        %1266 = vmatpush1.bf16.xpose.msra.mxu0 0
        %1267 = vmatprep.subr.bf16.mxu0 0
        %1268 = vmatpush1.bf16.xpose.msra.mxu0 0
        %1269 = vmatprep.subr.bf16.mxu0 0
        %1270 = vmatpush1.bf16.xpose.msra.mxu0 0
        %1271 = vmatprep.subr.bf16.mxu0 0
        %1272 = vmatpush1.bf16.xpose.msra.mxu0 0
        %1273 = vmatprep.subr.bf16.mxu0 0
        %1274 = vmatpush1.bf16.xpose.msra.mxu0 0
        %1275 = vmatprep.subr.bf16.mxu0 0
        %1276 = vmatpush1.bf16.xpose.msra.mxu0 0
        %1277 = vmatprep.subr.bf16.mxu0 0
        %1278 = vmatpush1.bf16.xpose.msra.mxu0 %v1261
        %1279 = vmatprep.subr.bf16.mxu0 0
        %1280 = vmatpush2.bf16.xpose.msra.mxu0 0
        %1281 = vmatprep.subr.bf16.mxu0 0
        %1282 = vmatpush2.bf16.xpose.msra.mxu0 0
        %1283 = vmatprep.subr.bf16.mxu0 0
        %1284 = vmatpush2.bf16.xpose.msra.mxu0 0
        %1285 = vmatprep.subr.bf16.mxu0 0
        %1286 = vmatpush2.bf16.xpose.msra.mxu0 0
        %1287 = vmatprep.subr.bf16.mxu0 0
        %1288 = vmatpush2.bf16.xpose.msra.mxu0 0
        %1289 = vmatprep.subr.bf16.mxu0 0
        %1290 = vmatpush2.bf16.xpose.msra.mxu0 0
        %1291 = vmatprep.subr.bf16.mxu0 0
        %1292 = vmatpush2.bf16.xpose.msra.mxu0 0
        %1293 = vmatprep.subr.bf16.mxu0 0
        %1294 = vmatpush2.bf16.xpose.msra.mxu0 0
        %1295 = vmatprep.mubr.bf16.mxu0 0
        %1296 = vmatmul.mubr.bf16.gmra.mxu0 %v1258
        %v1297 = vpop.f32.mrf.mxu0
        %v1298 = vadd.f32 0.0, %v1297
        %v1299 = vpop.f32.mrf.mxu0
        %v1300 = vpop.f32.mrf.mxu0
        %v1301 = vadd.f32 0.0, %v1300
        %v1302 = vpop.f32.mrf.mxu0
        %1303 = vdwg.mxu0
        %v1306 = vunpack.c.l.b16 %v908
        %v1307 = vunpack.c.l.b16 %v909
        %v1308 = vpack.c.b16 %v1307, %v1306
        %v1310 = vsel %vm1107, %v1308, 0
        %v1313 = vsel %vm1107, %v1147, 0
        %1315 = vmatprep.subr.bf16.mxu0 0
        %1316 = vmatpush1.bf16.xpose.msra.mxu0 0
        %1317 = vmatprep.subr.bf16.mxu0 0
        %1318 = vmatpush1.bf16.xpose.msra.mxu0 0
        %1319 = vmatprep.subr.bf16.mxu0 0
        %1320 = vmatpush1.bf16.xpose.msra.mxu0 0
        %1321 = vmatprep.subr.bf16.mxu0 0
        %1322 = vmatpush1.bf16.xpose.msra.mxu0 0
        %1323 = vmatprep.subr.bf16.mxu0 0
        %1324 = vmatpush1.bf16.xpose.msra.mxu0 0
        %1325 = vmatprep.subr.bf16.mxu0 0
        %1326 = vmatpush1.bf16.xpose.msra.mxu0 0
        %1327 = vmatprep.subr.bf16.mxu0 0
        %1328 = vmatpush1.bf16.xpose.msra.mxu0 0
        %1329 = vmatprep.subr.bf16.mxu0 0
        %1330 = vmatpush1.bf16.xpose.msra.mxu0 %v1313
        %1331 = vmatprep.subr.bf16.mxu0 0
        %1332 = vmatpush2.bf16.xpose.msra.mxu0 0
        %1333 = vmatprep.subr.bf16.mxu0 0
        %1334 = vmatpush2.bf16.xpose.msra.mxu0 0
        %1335 = vmatprep.subr.bf16.mxu0 0
        %1336 = vmatpush2.bf16.xpose.msra.mxu0 0
        %1337 = vmatprep.subr.bf16.mxu0 0
        %1338 = vmatpush2.bf16.xpose.msra.mxu0 0
        %1339 = vmatprep.subr.bf16.mxu0 0
        %1340 = vmatpush2.bf16.xpose.msra.mxu0 0
        %1341 = vmatprep.subr.bf16.mxu0 0
        %1342 = vmatpush2.bf16.xpose.msra.mxu0 0
        %1343 = vmatprep.subr.bf16.mxu0 0
        %1344 = vmatpush2.bf16.xpose.msra.mxu0 0
        %1345 = vmatprep.subr.bf16.mxu0 0
        %1346 = vmatpush2.bf16.xpose.msra.mxu0 0
        %1347 = vmatprep.mubr.bf16.mxu0 0
        %1348 = vmatmul.mubr.bf16.gmra.mxu0 %v1310
        %v1349 = vpop.f32.mrf.mxu0
        %v1350 = vadd.f32 0.0, %v1349
        %v1351 = vpop.f32.mrf.mxu0
        %v1352 = vpop.f32.mrf.mxu0
        %v1353 = vadd.f32 0.0, %v1352
        %v1354 = vpop.f32.mrf.mxu0
        %1355 = vdwg.mxu0
        %v1356 = vrcp.pop %v1134
        %v1357 = vrcp.pop %v1137
        %v1358 = vrcp.pop %v1140
        %v1359 = vrcp.pop %v1143
        %v1364 = vlaneseq
        %v1365 = vand.u32 %v1364, 127
        %v1366 = vlaneseq
        %v1367 = vshrl.u32 %v1366, 7
        %v1368 = vsub.s32 %v1365, %v1367
        %v1369 = vrot.slane %v1356, %v1368
        %v1370 = vlaneseq
        %v1371 = vshrl.u32 %v1370, 7
        %v1372 = vsub.s32 %v1365, %v1371
        %v1373 = vrot.slane %v1357, %v1372
        %v1374 = vlaneseq
        %v1375 = vshrl.u32 %v1374, 7
        %v1376 = vsub.s32 %v1365, %v1375
        %v1377 = vrot.slane %v1358, %v1376
        %v1378 = vlaneseq
        %v1379 = vshrl.u32 %v1378, 7
        %v1380 = vsub.s32 %v1365, %v1379
        %v1381 = vrot.slane %v1359, %v1380
        %vm1382 = vcmask 1042434
        %v1383 = vsel %vm1382, %v1369, %v1369
        %vm1384 = vcmask 1043459
        %v1385 = vsel %vm1384, %v1369, %v1383
        %vm1386 = vcmask 1044484
        %v1387 = vsel %vm1386, %v1369, %v1385
        %vm1388 = vcmask 1045509
        %v1389 = vsel %vm1388, %v1369, %v1387
        %vm1390 = vcmask 1046534
        %v1391 = vsel %vm1390, %v1369, %v1389
        %vm1392 = vcmask 1047559
        %v1393 = vsel %vm1392, %v1369, %v1391
        %v1394 = vsel %vm1382, %v1373, %v1373
        %v1395 = vsel %vm1384, %v1373, %v1394
        %v1396 = vsel %vm1386, %v1373, %v1395
        %v1397 = vsel %vm1388, %v1373, %v1396
        %v1398 = vsel %vm1390, %v1373, %v1397
        %v1399 = vsel %vm1392, %v1373, %v1398
        %v1400 = vsel %vm1382, %v1377, %v1377
        %v1401 = vsel %vm1384, %v1377, %v1400
        %v1402 = vsel %vm1386, %v1377, %v1401
        %v1403 = vsel %vm1388, %v1377, %v1402
        %v1404 = vsel %vm1390, %v1377, %v1403
        %v1405 = vsel %vm1392, %v1377, %v1404
        %v1406 = vsel %vm1382, %v1381, %v1381
        %v1407 = vsel %vm1384, %v1381, %v1406
        %v1408 = vsel %vm1386, %v1381, %v1407
        %v1409 = vsel %vm1388, %v1381, %v1408
        %v1410 = vsel %vm1390, %v1381, %v1409
        %v1411 = vsel %vm1392, %v1381, %v1410
        %v1416 = vmul.f32 %v1194, %v1393
        %v1417 = vmul.f32 %v1197, %v1393
        %v1418 = vmul.f32 %v1246, %v1399
        %v1419 = vmul.f32 %v1249, %v1399
        %v1420 = vmul.f32 %v1298, %v1405
        %v1421 = vmul.f32 %v1301, %v1405
        %v1422 = vmul.f32 %v1350, %v1411
        %v1423 = vmul.f32 %v1353, %v1411
        %v1424 = vpack.c.bf16 %v1417, %v1416
        %v1425 = vpack.c.bf16 %v1419, %v1418
        %v1426 = vpack.c.bf16 %v1421, %v1420
        %v1427 = vpack.c.bf16 %v1423, %v1422
        %v1428 = vld [vmem:[%s6] sm:$0xf]
        %v1429 = vld [vmem:[%s6 + $0x4] sm:$0xf]
        %v1430 = vld [vmem:[%s6 + $0x8] sm:$0xf]
        %v1431 = vld [vmem:[%s6 + $0xc] sm:$0xf]
        %v1432 = vld [vmem:[%s6 + $0x10] sm:$0xf]
        %v1433 = vld [vmem:[%s6 + $0x14] sm:$0xf]
        %v1434 = vld [vmem:[%s6 + $0x18] sm:$0xf]
        %v1435 = vld [vmem:[%s6 + $0x1c] sm:$0xf]
        %v1436 = vld [vmem:[%s7] sm:$0x1]
        %v1438 = vlaneseq
        %v1439 = vshrl.u32 %v1438, 7
        %v1440 = vsub.s32 0, %v1439
        %v1441 = vrot.slane %v1436, %v1440
        %1443 = vxpose.xlu0.c.b16.start [1/8] %v1424, 128
        %1444 = vxpose.xlu0.c.b16.cont [2/8] %v1425, 128
        %1445 = vxpose.xlu0.c.b16.cont [3/8] %v1426, 128
        %1446 = vxpose.xlu0.c.b16.cont [4/8] %v1427, 128
        %1447 = vxpose.xlu0.c.b16.cont [5/8] 0, 128
        %1448 = vxpose.xlu0.c.b16.cont [6/8] 0, 128
        %1449 = vxpose.xlu0.c.b16.cont [7/8] 0, 128
        %1450 = vxpose.xlu0.c.b16.end [8/8] 0, 128
        %v1451 = vpop.trf.xlu0
        %v1452 = vpop.trf.xlu0
        %v1453 = vpop.trf.xlu0
        %v1454 = vpop.trf.xlu0
        %v1455 = vpop.trf.xlu0
        %v1456 = vpop.trf.xlu0
        %v1457 = vpop.trf.xlu0
        %v1458 = vpop.trf.xlu0
        %v1467 = vunpack.c.l.b16 %v1428
        %v1468 = vunpack.c.l.b16 %v1429
        %v1469 = vunpack.c.l.b16 %v1430
        %v1470 = vunpack.c.l.b16 %v1431
        %v1471 = vunpack.c.l.b16 %v1432
        %v1472 = vunpack.c.l.b16 %v1433
        %v1473 = vunpack.c.l.b16 %v1434
        %v1474 = vunpack.c.l.b16 %v1435
        %v1475 = vpack.c.b16 %v1468, %v1467
        %v1476 = vpack.c.b16 %v1470, %v1469
        %v1477 = vpack.c.b16 %v1472, %v1471
        %v1478 = vpack.c.b16 %v1474, %v1473
        %vm1483 = vcmask 523264
        %v1485 = vsel %vm1483, %v1451, 0
        %1487 = vmatprep.subr.bf16.mxu0 0
        %1488 = vmatpush1.bf16.msra.mxu0 0
        %1489 = vmatprep.subr.bf16.mxu0 0
        %1490 = vmatpush1.bf16.msra.mxu0 0
        %1491 = vmatprep.subr.bf16.mxu0 0
        %1492 = vmatpush1.bf16.msra.mxu0 0
        %1493 = vmatprep.subr.bf16.mxu0 0
        %1494 = vmatpush1.bf16.msra.mxu0 0
        %1495 = vmatprep.subr.bf16.mxu0 0
        %1496 = vmatpush1.bf16.msra.mxu0 %v1478
        %1497 = vmatprep.subr.bf16.mxu0 0
        %1498 = vmatpush1.bf16.msra.mxu0 %v1477
        %1499 = vmatprep.subr.bf16.mxu0 0
        %1500 = vmatpush1.bf16.msra.mxu0 %v1476
        %1501 = vmatprep.subr.bf16.mxu0 0
        %1502 = vmatpush1.bf16.msra.mxu0 %v1475
        %1503 = vmatprep.subr.bf16.mxu0 0
        %1504 = vmatpush2.bf16.msra.mxu0 0
        %1505 = vmatprep.subr.bf16.mxu0 0
        %1506 = vmatpush2.bf16.msra.mxu0 0
        %1507 = vmatprep.subr.bf16.mxu0 0
        %1508 = vmatpush2.bf16.msra.mxu0 0
        %1509 = vmatprep.subr.bf16.mxu0 0
        %1510 = vmatpush2.bf16.msra.mxu0 0
        %1511 = vmatprep.subr.bf16.mxu0 0
        %1512 = vmatpush2.bf16.msra.mxu0 0
        %1513 = vmatprep.subr.bf16.mxu0 0
        %1514 = vmatpush2.bf16.msra.mxu0 0
        %1515 = vmatprep.subr.bf16.mxu0 0
        %1516 = vmatpush2.bf16.msra.mxu0 0
        %1517 = vmatprep.subr.bf16.mxu0 0
        %1518 = vmatpush2.bf16.msra.mxu0 0
        %1519 = vmatprep.mubr.bf16.mxu0 0
        %1520 = vmatmul.mubr.bf16.gmra.mxu0 %v1485
        %v1521 = vpop.f32.mrf.mxu0
        %v1522 = vadd.f32 %v1441, %v1521
        %v1523 = vpop.f32.mrf.mxu0
        %v1524 = vpop.f32.mrf.mxu0
        %v1525 = vpop.f32.mrf.mxu0
        %1526 = vdwg.mxu0
        %1527 = vst.msk [vmem:[%s310] sm:$0xff] %vm655, %v1522
        %s1528 = sand.u32 %s217, 1
        %s1529 = scalar_lea.sflag [#allocation5], %s1528
        %s1530 = sand.u32 %s217, 1
        %s1531 = smul.addr %s1530, 8
        %s1532 = scalar_lea.vmem [#allocation4], %s1531
        // Predicated region
        $region57: #{tpu_custom_call.1} parent=51 // pred_check
          %p1533 = pneg %p227
        $region58: #{tpu_custom_call.1} parent=51 // pred_check_branch
          %1535 = sbr.rel (%p1533) target = $region60
        $region59: #{tpu_custom_call.1} parent=51 // pred_region
          %s1537 = ssub.s32 128, 128
          %1538 = vsyncadd %s1529, %s1537
          %s1539 = sadd.s32 %s27, %s26
          %s1540 = smul.addr %s1539, 128
          %s1541 = scalar_lea.hbm %s8, %s1540
          %s1543 = sshll.u32 %s1532, 4
          %s1544 = int_to_ptr.vmem [resolvable:$true] %s1543
          %1546 = dma.vmem_to_hbm [thread:$0]  %s1544, 128, %s1541, %s1529
        $region60: #{tpu_custom_call.1} parent=51 // pred_fallthru
          _
      $region52: #{tpu_custom_call.1} parent=5 // pred_fallthru
        _
      %p1547 = scmp.le.s32.totalorder 2, %s17
      // Predicated region
      $region61: #{tpu_custom_call.1} parent=5 // pred_check
        %p1548 = pneg %p1547
      $region62: #{tpu_custom_call.1} parent=5 // pred_check_branch
        %1550 = sbr.rel (%p1548) target = $region64
      $region63: #{tpu_custom_call.1} parent=5 // pred_region
        %s1551 = ssub.s32 %s17, 2
        // Predicated region
        $region65: #{tpu_custom_call.1} parent=63 // pred_check
          %p1552 = pneg %p233
        $region66: #{tpu_custom_call.1} parent=63 // pred_check_branch
          %1554 = sbr.rel (%p1552) target = $region68
        $region67: #{tpu_custom_call.1} parent=63 // pred_region
          %s1555 = sand.u32 %s218, 1
          %s1556 = scalar_lea.sflag [#allocation5], %s1555
          %s1557 = sand.u32 %s218, 1
          %s1558 = smul.addr %s1557, 8
          %s1559 = scalar_lea.vmem [#allocation4], %s1558
          %1560 = dma.done %s1556, 128
        $region68: #{tpu_custom_call.1} parent=63 // pred_fallthru
          _
      $region64: #{tpu_custom_call.1} parent=5 // pred_fallthru
        _
    $region6: #{tpu_custom_call.1} parent=1 // loop_footer
      %s21 = sadd.s32 1, %s17
    $region7: #{tpu_custom_call.1} parent=1 // loop_footer_branch
      %16 = sbr.rel target = $region3
    $region8: #{tpu_custom_call.1} parent=1 // loop_exit
      _
    %1561 = vsyncpa [#allocation5], 1
    %s1562 = scalar_lea.sflag [#allocation5], 1
    %1563 = vsyncpa %s1562, 1

</llo_original>
